<compile_context>
chip_gen: v6e
topology: v6e:2x2x1
jax: 0.10.0
libtpu: 0.0.40
codegen_flags: <defaults>
</compile_context>

<pallas_src>
import functools

import jax
import jax.numpy as jnp
from jax.experimental import pallas as pl
from jax.experimental.pallas import tpu as pltpu

K_HOPS = 3          # TAGConv default K
BN_EPS = 1e-5
# The spec constructs TAGConv(..., add_self_loops=True); note stock PyG TAGConv
# normalizes with add_self_loops=False (the k=0 hop already carries the self
# term). Flip this flag to match that behavior if validating against PyG.
ADD_SELF_LOOPS = True


# ----------------------------- Pallas kernel -------------------------------

def tag_net_kernel(x0_ref, a_ref, w_ref, b_ref, pool_ref, wmlp_ref, bmlp_ref,
                   out_ref, x_state, hop_buf):
    """Fused: all TAG layers (grid axis 0) + global_mean_pool + final Linear.

    x0_ref   : (Np, Hp) f32   encoded node features (read at layer 0 only)
    a_ref    : (Np, Np) bf16  normalized adjacency, resident across layers
    w_ref    : (4*Hp, Hp) bf16 per-layer hop-concat weights (BN folded in)
    b_ref    : (1, Hp) f32    per-layer folded bias
    pool_ref : (Gp, Np) bf16  mean-pool matrix
    wmlp_ref : (Hp, Op) bf16  final linear weight
    bmlp_ref : (1, Op) f32    final linear bias
    out_ref  : (Gp, Op) f32   graph-level predictions
    x_state  : (Np, Hp) f32   VMEM scratch holding current node features
    hop_buf  : (Np, 4*Hp) bf16 VMEM scratch holding [x | Ax | A^2x | A^3x]
    """
    layer = pl.program_id(0)
    hp = x_state.shape[1]

    @pl.when(layer == 0)
    def _():
        x_state[...] = x0_ref[...]

    x = x_state[...]                                   # (Np, Hp) f32
    a = a_ref[...]                                     # (Np, Np) bf16

    # ---- TAGConv: build hop features, then one lane-dense MXU matmul ------
    xb = x.astype(jnp.bfloat16)
    hop_buf[:, 0:hp] = xb
    h = xb
    for k in range(1, K_HOPS + 1):
        h = jnp.dot(a, h, preferred_element_type=jnp.float32).astype(jnp.bfloat16)
        hop_buf[:, k * hp:(k + 1) * hp] = h

    # single (Np, 4*Hp) @ (4*Hp, Hp) matmul; BatchNorm already folded into W, b
    y = jnp.dot(hop_buf[...], w_ref[...], preferred_element_type=jnp.float32)
    y = y + b_ref[...]                                 # (1, Hp) broadcast, f32

    # ReLU + residual (dropout is identity in eval mode); epilogue stays f32
    x_new = x + jnp.maximum(y, 0.0)
    x_state[...] = x_new

    # ---- fused global_mean_pool + final Linear on the last layer ----------
    @pl.when(layer == pl.num_programs(0) - 1)
    def _():
        pooled = jnp.dot(pool_ref[...], x_new.astype(jnp.bfloat16),
                         preferred_element_type=jnp.float32)     # (Gp, Hp) f32
        out_ref[...] = jnp.dot(pooled.astype(jnp.bfloat16), wmlp_ref[...],
                               preferred_element_type=jnp.float32) + bmlp_ref[...]


# ------------------------------ glue (JAX) ----------------------------------

def _round_up(x, m):
    return (x + m - 1) // m * m


def _pad2(x, rows, cols):
    return jnp.zeros((rows, cols), x.dtype).at[:x.shape[0], :x.shape[1]].set(x)


def atom_encoder(x_int, emb_tables):
    """OGB AtomEncoder: sum of per-categorical-feature embedding lookups."""
    out = jnp.zeros((x_int.shape[0], emb_tables[0].shape[1]), jnp.float32)
    for f, table in enumerate(emb_tables):
        out = out + jnp.take(table, x_int[:, f], axis=0)
    return out


def dense_gcn_norm(edge_index, num_nodes):
    """Dense symmetric gcn_norm (optionally with self loops), as in TAGConv."""
    src, dst = edge_index[0], edge_index[1]
    a = jnp.zeros((num_nodes, num_nodes), jnp.float32)
    a = a.at[dst, src].add(1.0)                       # message src -> dst
    if ADD_SELF_LOOPS:
        a = a + jnp.eye(num_nodes, dtype=jnp.float32)
    deg = a.sum(axis=1)
    dinv = jnp.where(deg > 0, jax.lax.rsqrt(deg), 0.0)
    return dinv[:, None] * a * dinv[None, :]


def mean_pool_matrix(batch, num_graphs):
    """P[g, n] = 1/|graph g| if node n in graph g (global_mean_pool as matmul)."""
    onehot = (batch[None, :] == jnp.arange(num_graphs)[:, None]).astype(jnp.float32)
    counts = jnp.maximum(onehot.sum(axis=1, keepdims=True), 1.0)
    return onehot / counts


def fold_layer_params(lp, hid, hp):
    """Fold eval-mode BatchNorm into the TAGConv weights / bias and pad."""
    scale = (lp["gamma"] * jax.lax.rsqrt(lp["rvar"] + BN_EPS)).reshape(-1)   # (H,)
    w_f = lp["w"] * scale[None, None, :]                                     # (K+1,H,H)
    b_f = (lp["b"].reshape(-1) - lp["rmean"].reshape(-1)) * scale + lp["beta"].reshape(-1)
    w_pad = jnp.zeros((K_HOPS + 1, hp, hp), jnp.float32).at[:, :hid, :hid].set(w_f)
    w_cat = w_pad.reshape((K_HOPS + 1) * hp, hp).astype(jnp.bfloat16)        # (4Hp, Hp)
    b_pad = jnp.zeros((1, hp), jnp.float32).at[0, :hid].set(b_f)
    return w_cat, b_pad


# -------------------------------- forward -----------------------------------

@functools.partial(jax.jit, static_argnames=("num_graphs",))
def tag_net_forward(params, x_int, edge_index, batch, num_graphs):
    n = x_int.shape[0]
    hid = params["w_mlp"].shape[0]
    out_ch = params["w_mlp"].shape[1]
    n_layers = len(params["layers"])

    # lane-dense padded sizes
    np_ = _round_up(n, 128)
    hp = _round_up(hid, 128)
    op = _round_up(out_ch, 128)
    gp = _round_up(max(num_graphs, 1), 8)

    # --- glue: encode, adjacency, pool matrix, BN folding, padding ---------
    x0 = atom_encoder(x_int, params["emb"])                    # (N, H)  f32
    a = dense_gcn_norm(edge_index, n)                          # (N, N)  f32
    pool = mean_pool_matrix(batch, num_graphs)                 # (G, N)  f32

    x0_p = _pad2(x0, np_, hp)                                  # f32
    a_p = _pad2(a, np_, np_).astype(jnp.bfloat16)              # bf16 MXU operand
    pool_p = _pad2(pool, gp, np_).astype(jnp.bfloat16)
    wmlp_p = _pad2(params["w_mlp"], hp, op).astype(jnp.bfloat16)
    bmlp_p = _pad2(params["b_mlp"], 1, op)                     # f32

    w_list, b_list = [], []
    for lp in params["layers"]:
        w_l, b_l = fold_layer_params(lp, hid, hp)
        w_list.append(w_l)
        b_list.append(b_l)
    w_all = jnp.stack(w_list)                                  # (L, 4Hp, Hp) bf16
    b_all = jnp.stack(b_list)                                  # (L, 1, Hp)   f32

    out_p = pl.pallas_call(
        tag_net_kernel,
        out_shape=jax.ShapeDtypeStruct((gp, op), jnp.float32),
        grid_spec=pltpu.PrefetchScalarGridSpec(
            num_scalar_prefetch=0,
            grid=(n_layers,),
            in_specs=[
                pl.BlockSpec((np_, hp), lambda l: (0, 0)),                     # x0
                pl.BlockSpec((np_, np_), lambda l: (0, 0)),                    # A (resident)
                pl.BlockSpec((None, (K_HOPS + 1) * hp, hp), lambda l: (l, 0, 0)),  # W_l
                pl.BlockSpec((None, 1, hp), lambda l: (l, 0, 0)),              # b_l
                pl.BlockSpec((gp, np_), lambda l: (0, 0)),                     # pool
                pl.BlockSpec((hp, op), lambda l: (0, 0)),                      # w_mlp
                pl.BlockSpec((1, op), lambda l: (0, 0)),                       # b_mlp
            ],
            out_specs=pl.BlockSpec((gp, op), lambda l: (0, 0)),
            scratch_shapes=[
                pltpu.VMEM((np_, hp), jnp.float32),                  # x state
                pltpu.VMEM((np_, (K_HOPS + 1) * hp), jnp.bfloat16),  # hop concat buffer
            ],
        ),
        compiler_params=pltpu.CompilerParams(
            dimension_semantics=("arbitrary",),      # layer axis is sequential
            vmem_limit_bytes=64 * 1024 * 1024,
        ),
    )(x0_p, a_p, w_all, b_all, pool_p, wmlp_p, bmlp_p)

    return out_p[:num_graphs, :out_ch]


# --------------------------- pure-JAX reference ------------------------------

def tag_net_reference(params, x_int, edge_index, batch, num_graphs):
    x = atom_encoder(x_int, params["emb"])
    a = dense_gcn_norm(edge_index, x.shape[0])
    for lp in params["layers"]:
        h = x
        acc = jnp.dot(x, lp["w"][0])
        for k in range(1, K_HOPS + 1):
            h = jnp.dot(a, h)
            acc = acc + jnp.dot(h, lp["w"][k])
        acc = acc + lp["b"]
        inv_std = jax.lax.rsqrt(lp["rvar"] + BN_EPS)
        y = (acc - lp["rmean"]) * inv_std * lp["gamma"] + lp["beta"]
        x = x + jnp.maximum(y, 0.0)                      # relu + residual
    pool = mean_pool_matrix(batch, num_graphs)
    return jnp.dot(jnp.dot(pool, x), params["w_mlp"]) + params["b_mlp"]


# --------------------------------- params ------------------------------------

def init_params(key, hid, out_channels, num_layers, atom_vocab_sizes):
    keys = jax.random.split(key, 4 + num_layers)
    params = {}
    params["emb"] = [
        0.1 * jax.random.normal(jax.random.fold_in(keys[0], i), (v, hid), jnp.float32)
        for i, v in enumerate(atom_vocab_sizes)
    ]
    layers = []
    for l in range(num_layers):
        kl = jax.random.split(keys[1 + l], 6)
        layers.append(dict(
            w=0.1 * jax.random.normal(kl[0], (K_HOPS + 1, hid, hid), jnp.float32),
            b=0.01 * jax.random.normal(kl[1], (1, hid), jnp.float32),
            gamma=1.0 + 0.05 * jax.random.normal(kl[2], (1, hid), jnp.float32),
            beta=0.01 * jax.random.normal(kl[3], (1, hid), jnp.float32),
            rmean=0.05 * jax.random.normal(kl[4], (1, hid), jnp.float32),
            rvar=1.0 + 0.1 * jax.nn.softplus(jax.random.normal(kl[5], (1, hid), jnp.float32)),
        ))
    params["layers"] = layers
    params["w_mlp"] = 0.1 * jax.random.normal(keys[-2], (hid, out_channels), jnp.float32)
    params["b_mlp"] = 0.01 * jax.random.normal(keys[-1], (1, out_channels), jnp.float32)
    return params


# ---------------------------------- main -------------------------------------

if __name__ == "__main__":
    key = jax.random.PRNGKey(0)

    NUM_NODES = 16
    HID = 32
    OUT = 8
    NUM_LAYERS = 2
    NUM_GRAPHS = 2
    ATOM_VOCAB = [10, 5, 7]          # 3 synthetic categorical atom features

    k_feat, k_edge, k_param = jax.random.split(key, 3)

    # node features: integer categorical atom features (N, num_features)
    x_int = jax.random.randint(
        k_feat, (NUM_NODES, len(ATOM_VOCAB)), 0,
        jnp.array(ATOM_VOCAB, jnp.int32)[None, :], dtype=jnp.int32)

    # random undirected edges within each graph half
    src = jax.random.randint(k_edge, (24,), 0, NUM_NODES // 2, dtype=jnp.int32)
    dst = jax.random.randint(jax.random.fold_in(k_edge, 1), (24,), 0,
                             NUM_NODES // 2, dtype=jnp.int32)
    src = jnp.concatenate([src, src + NUM_NODES // 2])
    dst = jnp.concatenate([dst, dst + NUM_NODES // 2])
    edge_index = jnp.stack([jnp.concatenate([src, dst]),
                            jnp.concatenate([dst, src])])   # make undirected

    # graph assignment: first half -> graph 0, second half -> graph 1
    batch = jnp.concatenate([jnp.zeros(NUM_NODES // 2, jnp.int32),
                             jnp.ones(NUM_NODES // 2, jnp.int32)])

    params = init_params(k_param, HID, OUT, NUM_LAYERS, ATOM_VOCAB)

    out = tag_net_forward(params, x_int, edge_index, batch, NUM_GRAPHS)
    out = jax.block_until_ready(out)

    ref = tag_net_reference(params, x_int, edge_index, batch, NUM_GRAPHS)

    assert out.shape == (NUM_GRAPHS, OUT)
    assert bool(jnp.all(jnp.isfinite(out)))
    max_err = float(jnp.max(jnp.abs(out - ref)))
    assert max_err < 3e-2, f"kernel vs f32 reference mismatch: max abs err = {max_err}"
    print("KERNEL_OK")
</pallas_src>

<mosaic_0001>
module attributes {stable_mosaic.version = 11 : i64} {
  func.func private @main(%arg0: i32) attributes {dimension_semantics = [#tpu.dimension_semantics<core_parallel>], iteration_bounds = array<i64: 2>, tpu.core_type = #tpu.core_type<sc_scalar_subcore>, window_params = []} {
    return
  }
}

module attributes {stable_mosaic.version = 11 : i64} {
  func.func private @main(%arg0: i32) attributes {dimension_semantics = [#tpu.dimension_semantics<core_parallel>], iteration_bounds = array<i64: 2>, tpu.core_type = #tpu.core_type<sc_scalar_subcore>, window_params = []} {
    return
  }
}

module attributes {stable_mosaic.version = 11 : i64} {
  func.func @tag_net_kernel(%arg0: i32, %arg1: memref<128x128xf32, #tpu.memory_space<vmem>>, %arg2: memref<128x128xbf16, #tpu.memory_space<vmem>>, %arg3: memref<1x512x128xbf16, #tpu.memory_space<vmem>>, %arg4: memref<1x1x128xf32, #tpu.memory_space<vmem>>, %arg5: memref<8x128xbf16, #tpu.memory_space<vmem>>, %arg6: memref<128x128xbf16, #tpu.memory_space<vmem>>, %arg7: memref<1x128xf32, #tpu.memory_space<vmem>>, %arg8: memref<8x128xf32, #tpu.memory_space<vmem>>, %arg9: memref<128x128xf32, #tpu.memory_space<vmem>>, %arg10: memref<128x512xbf16, #tpu.memory_space<vmem>>) attributes {dimension_semantics = [#tpu.dimension_semantics<arbitrary>], iteration_bounds = array<i64: 2>, scalar_prefetch = 0 : i64, scratch_operands = 2 : i64, tpu.core_type = #tpu.core_type<tc>, window_params = [{pipeline_mode = #tpu.pipeline_mode<synchronous>, transform_indices = @transform_0, window_bounds = array<i64: 128, 128>}, {pipeline_mode = #tpu.pipeline_mode<synchronous>, transform_indices = @transform_1, window_bounds = array<i64: 128, 128>}, {transform_indices = @transform_2, window_bounds = array<i64: 1, 512, 128>}, {transform_indices = @transform_3, window_bounds = array<i64: 1, 1, 128>}, {pipeline_mode = #tpu.pipeline_mode<synchronous>, transform_indices = @transform_4, window_bounds = array<i64: 8, 128>}, {pipeline_mode = #tpu.pipeline_mode<synchronous>, transform_indices = @transform_5, window_bounds = array<i64: 128, 128>}, {pipeline_mode = #tpu.pipeline_mode<synchronous>, transform_indices = @transform_6, window_bounds = array<i64: 1, 128>}, {pipeline_mode = #tpu.pipeline_mode<synchronous>, transform_indices = @transform_7, window_bounds = array<i64: 8, 128>}]} {
    %c0_i32 = arith.constant 0 : i32
    %0 = arith.cmpi eq, %arg0, %c0_i32 : i32
    %1 = arith.extui %0 : i1 to i32
    %c0_i32_0 = arith.constant 0 : i32
    %2 = arith.cmpi ne, %1, %c0_i32_0 : i32
    scf.if %2 {
      %c0_24 = arith.constant 0 : index
      %c0_25 = arith.constant 0 : index
      %31 = vector.load %arg1[%c0_24, %c0_25] : memref<128x128xf32, #tpu.memory_space<vmem>>, vector<128x128xf32>
      %c0_26 = arith.constant 0 : index
      %c0_27 = arith.constant 0 : index
      %32 = vector.load %arg9[%c0_26, %c0_27] : memref<128x128xf32, #tpu.memory_space<vmem>>, vector<128x128xf32>
      tpu.vector_store %arg9[%c0_26, %c0_27], %31 {strides = array<i32>} : memref<128x128xf32, #tpu.memory_space<vmem>>, vector<128x128xf32>,
    } else {
    }
    %c0 = arith.constant 0 : index
    %c0_1 = arith.constant 0 : index
    %3 = vector.load %arg9[%c0, %c0_1] : memref<128x128xf32, #tpu.memory_space<vmem>>, vector<128x128xf32>
    %c0_2 = arith.constant 0 : index
    %c0_3 = arith.constant 0 : index
    %4 = vector.load %arg2[%c0_2, %c0_3] : memref<128x128xbf16, #tpu.memory_space<vmem>>, vector<128x128xbf16>
    %5 = arith.truncf %3 : vector<128x128xf32> to vector<128x128xbf16>
    %c0_4 = arith.constant 0 : index
    %c0_5 = arith.constant 0 : index
    %6 = vector.load %arg10[%c0_4, %c0_5] : memref<128x512xbf16, #tpu.memory_space<vmem>>, vector<128x128xbf16>
    tpu.vector_store %arg10[%c0_4, %c0_5], %5 {strides = array<i32>} : memref<128x512xbf16, #tpu.memory_space<vmem>>, vector<128x128xbf16>,
    %cst = arith.constant dense<0.000000e+00> : vector<128x128xf32>
    %7 = tpu.matmul %4, %5, %cst {dimension_numbers = #tpu.dot_dimension_numbers<[1], [0], [0], [1], [0, 0, 1, 1], [], []>} : vector<128x128xbf16>, vector<128x128xbf16>, vector<128x128xf32> -> vector<128x128xf32>
    %8 = arith.truncf %7 : vector<128x128xf32> to vector<128x128xbf16>
    %c0_6 = arith.constant 0 : index
    %c128 = arith.constant 128 : index
    %9 = vector.load %arg10[%c0_6, %c128] : memref<128x512xbf16, #tpu.memory_space<vmem>>, vector<128x128xbf16>
    tpu.vector_store %arg10[%c0_6, %c128], %8 {strides = array<i32>} : memref<128x512xbf16, #tpu.memory_space<vmem>>, vector<128x128xbf16>,
    %cst_7 = arith.constant dense<0.000000e+00> : vector<128x128xf32>
    %10 = tpu.matmul %4, %8, %cst_7 {dimension_numbers = #tpu.dot_dimension_numbers<[1], [0], [0], [1], [0, 0, 1, 1], [], []>} : vector<128x128xbf16>, vector<128x128xbf16>, vector<128x128xf32> -> vector<128x128xf32>
    %11 = arith.truncf %10 : vector<128x128xf32> to vector<128x128xbf16>
    %c0_8 = arith.constant 0 : index
    %c256 = arith.constant 256 : index
    %12 = vector.load %arg10[%c0_8, %c256] : memref<128x512xbf16, #tpu.memory_space<vmem>>, vector<128x128xbf16>
    tpu.vector_store %arg10[%c0_8, %c256], %11 {strides = array<i32>} : memref<128x512xbf16, #tpu.memory_space<vmem>>, vector<128x128xbf16>,
    %cst_9 = arith.constant dense<0.000000e+00> : vector<128x128xf32>
    %13 = tpu.matmul %4, %11, %cst_9 {dimension_numbers = #tpu.dot_dimension_numbers<[1], [0], [0], [1], [0, 0, 1, 1], [], []>} : vector<128x128xbf16>, vector<128x128xbf16>, vector<128x128xf32> -> vector<128x128xf32>
    %14 = arith.truncf %13 : vector<128x128xf32> to vector<128x128xbf16>
    %c0_10 = arith.constant 0 : index
    %c384 = arith.constant 384 : index
    %15 = vector.load %arg10[%c0_10, %c384] : memref<128x512xbf16, #tpu.memory_space<vmem>>, vector<128x128xbf16>
    tpu.vector_store %arg10[%c0_10, %c384], %14 {strides = array<i32>} : memref<128x512xbf16, #tpu.memory_space<vmem>>, vector<128x128xbf16>,
    %c0_11 = arith.constant 0 : index
    %c0_12 = arith.constant 0 : index
    %16 = vector.load %arg10[%c0_11, %c0_12] : memref<128x512xbf16, #tpu.memory_space<vmem>>, vector<128x512xbf16>
    %c0_13 = arith.constant 0 : index
    %c0_14 = arith.constant 0 : index
    %c0_15 = arith.constant 0 : index
    %17 = vector.load %arg3[%c0_13, %c0_14, %c0_15] : memref<1x512x128xbf16, #tpu.memory_space<vmem>>, vector<1x512x128xbf16>
    %18 = vector.shape_cast %17 : vector<1x512x128xbf16> to vector<512x128xbf16>
    %cst_16 = arith.constant dense<0.000000e+00> : vector<128x128xf32>
    %19 = tpu.matmul %16, %18, %cst_16 {dimension_numbers = #tpu.dot_dimension_numbers<[1], [0], [0], [1], [0, 0, 1, 1], [], []>} : vector<128x512xbf16>, vector<512x128xbf16>, vector<128x128xf32> -> vector<128x128xf32>
    %c0_17 = arith.constant 0 : index
    %c0_18 = arith.constant 0 : index
    %c0_19 = arith.constant 0 : index
    %20 = vector.load %arg4[%c0_17, %c0_18, %c0_19] : memref<1x1x128xf32, #tpu.memory_space<vmem>>, vector<1x1x128xf32>
    %21 = vector.shape_cast %20 : vector<1x1x128xf32> to vector<1x128xf32>
    %22 = vector.broadcast %21 : vector<1x128xf32> to vector<128x128xf32>
    %23 = arith.addf %19, %22 : vector<128x128xf32>
    %cst_20 = arith.constant 0.000000e+00 : f32
    %24 = vector.broadcast %cst_20 : f32 to vector<128x128xf32>
    %25 = arith.maximumf %23, %24 : vector<128x128xf32>
    %26 = arith.addf %3, %25 : vector<128x128xf32>
    %c0_21 = arith.constant 0 : index
    %c0_22 = arith.constant 0 : index
    %27 = vector.load %arg9[%c0_21, %c0_22] : memref<128x128xf32, #tpu.memory_space<vmem>>, vector<128x128xf32>
    tpu.vector_store %arg9[%c0_21, %c0_22], %26 {strides = array<i32>} : memref<128x128xf32, #tpu.memory_space<vmem>>, vector<128x128xf32>,
    %c1_i32 = arith.constant 1 : i32
    %28 = arith.cmpi eq, %arg0, %c1_i32 : i32
    %29 = arith.extui %28 : i1 to i32
    %c0_i32_23 = arith.constant 0 : i32
    %30 = arith.cmpi ne, %29, %c0_i32_23 : i32
    scf.if %30 {
      %c0_24 = arith.constant 0 : index
      %c0_25 = arith.constant 0 : index
      %31 = vector.load %arg5[%c0_24, %c0_25] : memref<8x128xbf16, #tpu.memory_space<vmem>>, vector<8x128xbf16>
      %32 = arith.truncf %26 : vector<128x128xf32> to vector<128x128xbf16>
      %cst_26 = arith.constant dense<0.000000e+00> : vector<8x128xf32>
      %33 = tpu.matmul %31, %32, %cst_26 {dimension_numbers = #tpu.dot_dimension_numbers<[1], [0], [0], [1], [0, 0, 1, 1], [], []>} : vector<8x128xbf16>, vector<128x128xbf16>, vector<8x128xf32> -> vector<8x128xf32>
      %34 = arith.truncf %33 : vector<8x128xf32> to vector<8x128xbf16>
      %c0_27 = arith.constant 0 : index
      %c0_28 = arith.constant 0 : index
      %35 = vector.load %arg6[%c0_27, %c0_28] : memref<128x128xbf16, #tpu.memory_space<vmem>>, vector<128x128xbf16>
      %cst_29 = arith.constant dense<0.000000e+00> : vector<8x128xf32>
      %36 = tpu.matmul %34, %35, %cst_29 {dimension_numbers = #tpu.dot_dimension_numbers<[1], [0], [0], [1], [0, 0, 1, 1], [], []>} : vector<8x128xbf16>, vector<128x128xbf16>, vector<8x128xf32> -> vector<8x128xf32>
      %c0_30 = arith.constant 0 : index
      %c0_31 = arith.constant 0 : index
      %37 = vector.load %arg7[%c0_30, %c0_31] : memref<1x128xf32, #tpu.memory_space<vmem>>, vector<1x128xf32>
      %38 = vector.broadcast %37 : vector<1x128xf32> to vector<8x128xf32>
      %39 = arith.addf %36, %38 : vector<8x128xf32>
      %c0_32 = arith.constant 0 : index
      %c0_33 = arith.constant 0 : index
      %40 = vector.load %arg8[%c0_32, %c0_33] : memref<8x128xf32, #tpu.memory_space<vmem>>, vector<8x128xf32>
      tpu.vector_store %arg8[%c0_32, %c0_33], %39 {strides = array<i32>} : memref<8x128xf32, #tpu.memory_space<vmem>>, vector<8x128xf32>,
    } else {
    }
    return
  }
  func.func @transform_0(%arg0: i32) -> (i32, i32) {
    %c0_i32 = arith.constant 0 : i32
    %c0_i32_0 = arith.constant 0 : i32
    %c0_i32_1 = arith.constant 0 : i32
    return %c0_i32, %c0_i32_0 : i32, i32
  }
  func.func @transform_1(%arg0: i32) -> (i32, i32) {
    %c0_i32 = arith.constant 0 : i32
    %c0_i32_0 = arith.constant 0 : i32
    %c0_i32_1 = arith.constant 0 : i32
    return %c0_i32, %c0_i32_0 : i32, i32
  }
  func.func @transform_2(%arg0: i32) -> (i32, i32, i32) {
    %c0_i32 = arith.constant 0 : i32
    %c0_i32_0 = arith.constant 0 : i32
    %c0_i32_1 = arith.constant 0 : i32
    return %arg0, %c0_i32, %c0_i32_0 : i32, i32, i32
  }
  func.func @transform_3(%arg0: i32) -> (i32, i32, i32) {
    %c0_i32 = arith.constant 0 : i32
    %c0_i32_0 = arith.constant 0 : i32
    %c0_i32_1 = arith.constant 0 : i32
    return %arg0, %c0_i32, %c0_i32_0 : i32, i32, i32
  }
  func.func @transform_4(%arg0: i32) -> (i32, i32) {
    %c0_i32 = arith.constant 0 : i32
    %c0_i32_0 = arith.constant 0 : i32
    %c0_i32_1 = arith.constant 0 : i32
    return %c0_i32, %c0_i32_0 : i32, i32
  }
  func.func @transform_5(%arg0: i32) -> (i32, i32) {
    %c0_i32 = arith.constant 0 : i32
    %c0_i32_0 = arith.constant 0 : i32
    %c0_i32_1 = arith.constant 0 : i32
    return %c0_i32, %c0_i32_0 : i32, i32
  }
  func.func @transform_6(%arg0: i32) -> (i32, i32) {
    %c0_i32 = arith.constant 0 : i32
    %c0_i32_0 = arith.constant 0 : i32
    %c0_i32_1 = arith.constant 0 : i32
    return %c0_i32, %c0_i32_0 : i32, i32
  }
  func.func @transform_7(%arg0: i32) -> (i32, i32) {
    %c0_i32 = arith.constant 0 : i32
    %c0_i32_0 = arith.constant 0 : i32
    %c0_i32_1 = arith.constant 0 : i32
    return %c0_i32, %c0_i32_0 : i32, i32
  }
}

</mosaic_0001>

<llo_original>
// kernel: tag_net_forward.1
$region0: #{tag_net_forward.1}
  #allocation0 [shape = 'u32[]', space=smem, size = 0x4, offset = 0x4, fixed_abs, tag = 'smem constant byte address 0x4 - core index']
  #allocation1 [shape = 'u32[144,128]{1,0:T(1,128)}', space=vmem, size = 0x12000, scoped, tag = 'internal scratch']
  #allocation2 [shape = 'f32[128,128]{1,0:T(8,128)}', space=vmem, size = 0x10000, scoped, tag = 'scratch operand']
  #allocation3 [shape = 'bf16[128,512]{1,0:T(8,128)(2,1)}', space=vmem, size = 0x20000, scoped, tag = 'scratch operand']
  %s0 = inlined_call_operand.vmem [shape: f32[128,128], index: 0, kind: input, shape index: {}]
  %s1 = inlined_call_operand.vmem [shape: bf16[128,128], index: 1, kind: input, shape index: {}]
  %s2 = inlined_call_operand.vmem [shape: bf16[2,512,128], index: 2, kind: input, shape index: {}]
  %s3 = inlined_call_operand.vmem [shape: f32[2,1,128], index: 3, kind: input, shape index: {}]
  %s4 = inlined_call_operand.vmem [shape: bf16[8,128], index: 4, kind: input, shape index: {}]
  %s5 = inlined_call_operand.vmem [shape: bf16[128,128], index: 5, kind: input, shape index: {}]
  %s6 = inlined_call_operand.vmem [shape: f32[1,128], index: 6, kind: input, shape index: {}]
  %s7 = inlined_call_operand.vmem [shape: f32[8,128], index: 7, kind: output, shape index: {}]
  %s8 = sld [smem:[#allocation0]]
  $region69: #{tag_net_forward.1} parent=0
    _
  %s10 = ssub.s32 1, %s8
  %s11 = scalar_select 0, %s10, %s8
  loop: start=0, step=1, limit=4
  $region2: #{tag_net_forward.1} parent=0 // loop_pre_header
    _
  $region3: #{tag_net_forward.1} parent=0 // loop_header
    %s13 = sphi 0, %s17
    %p14 = scmp.ge.s32.totalorder %s13, 4
    %s21 = sphi 0, %s21
    %s23 = sphi 0, %s21
    %s24 = sphi 0, %s23
    %s38 = sphi 0, %s24
    %s42 = sphi 0, %s42
    %s44 = sphi 0, %s42
    %s45 = sphi 0, %s44
    %s59 = sphi 0, %s45
    %s65 = sphi 0, %s67
    %s68 = sphi 0, %s65
    %s69 = sphi 0, %s68
    %s85 = sphi 0, %s69
    %s91 = sphi 0, %s93
    %s94 = sphi 0, %s91
    %s95 = sphi 0, %s94
    %s111 = sphi 0, %s95
    %s115 = sphi 0, %s115
    %s117 = sphi 0, %s115
    %s118 = sphi 0, %s117
    %s132 = sphi 0, %s118
    %s136 = sphi 0, %s136
    %s138 = sphi 0, %s136
    %s139 = sphi 0, %s138
    %s153 = sphi 0, %s139
    %s157 = sphi 0, %s157
    %s159 = sphi 0, %s157
    %s160 = sphi 0, %s159
    %s174 = sphi 0, %s160
    %s178 = sphi 0, %s178
    %s180 = sphi 0, %s178
    %s181 = sphi 0, %s180
    %s195 = sphi 0, %s181
  $region4: #{tag_net_forward.1} parent=0 // loop_header_branch
    %16 = sbr.rel (%p14) target = $region8
  $region5: #{tag_net_forward.1} parent=0 // loop_body
    %s18 = ssub.s32 %s13, 1
    %s19 = ssub.s32 %s13, 2
    %s20 = sadd.s32 %s13, 1
    %s22 = sadd.s32 %s21, 1
    %p25 = scmp.eq.s32.totalorder %s13, 1
    %p26 = scmp.ne.s32.totalorder %s21, %s23
    %p27 = scmp.eq.s32.totalorder %s13, 0
    %p28 = por %p26, %p27
    %p29 = scmp.ne.s32.totalorder %s21, %s23
    %p30 = scmp.eq.s32.totalorder %s18, 1
    %p31 = por %p29, %p30
    %p32 = scmp.ne.s32.totalorder %s23, %s24
    %p33 = scmp.eq.s32.totalorder %s18, 0
    %p34 = por %p32, %p33
    %p35 = scmp.ne.s32.totalorder %s23, %s24
    %p36 = scmp.eq.s32.totalorder %s19, 1
    %p37 = por %p35, %p36
    %p39 = scmp.ne.s32.totalorder %s24, %s38
    %p40 = scmp.eq.s32.totalorder %s19, 0
    %p41 = por %p39, %p40
    %s43 = sadd.s32 %s42, 1
    %p46 = scmp.eq.s32.totalorder %s13, 1
    %p47 = scmp.ne.s32.totalorder %s42, %s44
    %p48 = scmp.eq.s32.totalorder %s13, 0
    %p49 = por %p47, %p48
    %p50 = scmp.ne.s32.totalorder %s42, %s44
    %p51 = scmp.eq.s32.totalorder %s18, 1
    %p52 = por %p50, %p51
    %p53 = scmp.ne.s32.totalorder %s44, %s45
    %p54 = scmp.eq.s32.totalorder %s18, 0
    %p55 = por %p53, %p54
    %p56 = scmp.ne.s32.totalorder %s44, %s45
    %p57 = scmp.eq.s32.totalorder %s19, 1
    %p58 = por %p56, %p57
    %p60 = scmp.ne.s32.totalorder %s45, %s59
    %p61 = scmp.eq.s32.totalorder %s19, 0
    %p62 = por %p60, %p61
    %s63 = ssub.s32 %s13, %s20
    %p64 = scmp.eq.s32.totalorder %s63, 0
    %s66 = sadd.s32 %s65, 1
    %s67 = scalar_select %p64, %s65, %s66
    %p70 = pneg %p64
    %p71 = scmp.eq.s32.totalorder %s13, 1
    %p72 = por %p70, %p71
    %p73 = scmp.ne.s32.totalorder %s65, %s68
    %p74 = scmp.eq.s32.totalorder %s13, 0
    %p75 = por %p73, %p74
    %p76 = scmp.ne.s32.totalorder %s65, %s68
    %p77 = scmp.eq.s32.totalorder %s18, 1
    %p78 = por %p76, %p77
    %p79 = scmp.ne.s32.totalorder %s68, %s69
    %p80 = scmp.eq.s32.totalorder %s18, 0
    %p81 = por %p79, %p80
    %p82 = scmp.ne.s32.totalorder %s68, %s69
    %p83 = scmp.eq.s32.totalorder %s19, 1
    %p84 = por %p82, %p83
    %p86 = scmp.ne.s32.totalorder %s69, %s85
    %p87 = scmp.eq.s32.totalorder %s19, 0
    %p88 = por %p86, %p87
    %s89 = ssub.s32 %s13, %s20
    %p90 = scmp.eq.s32.totalorder %s89, 0
    %s92 = sadd.s32 %s91, 1
    %s93 = scalar_select %p90, %s91, %s92
    %p96 = pneg %p90
    %p97 = scmp.eq.s32.totalorder %s13, 1
    %p98 = por %p96, %p97
    %p99 = scmp.ne.s32.totalorder %s91, %s94
    %p100 = scmp.eq.s32.totalorder %s13, 0
    %p101 = por %p99, %p100
    %p102 = scmp.ne.s32.totalorder %s91, %s94
    %p103 = scmp.eq.s32.totalorder %s18, 1
    %p104 = por %p102, %p103
    %p105 = scmp.ne.s32.totalorder %s94, %s95
    %p106 = scmp.eq.s32.totalorder %s18, 0
    %p107 = por %p105, %p106
    %p108 = scmp.ne.s32.totalorder %s94, %s95
    %p109 = scmp.eq.s32.totalorder %s19, 1
    %p110 = por %p108, %p109
    %p112 = scmp.ne.s32.totalorder %s95, %s111
    %p113 = scmp.eq.s32.totalorder %s19, 0
    %p114 = por %p112, %p113
    %s116 = sadd.s32 %s115, 1
    %p119 = scmp.eq.s32.totalorder %s13, 1
    %p120 = scmp.ne.s32.totalorder %s115, %s117
    %p121 = scmp.eq.s32.totalorder %s13, 0
    %p122 = por %p120, %p121
    %p123 = scmp.ne.s32.totalorder %s115, %s117
    %p124 = scmp.eq.s32.totalorder %s18, 1
    %p125 = por %p123, %p124
    %p126 = scmp.ne.s32.totalorder %s117, %s118
    %p127 = scmp.eq.s32.totalorder %s18, 0
    %p128 = por %p126, %p127
    %p129 = scmp.ne.s32.totalorder %s117, %s118
    %p130 = scmp.eq.s32.totalorder %s19, 1
    %p131 = por %p129, %p130
    %p133 = scmp.ne.s32.totalorder %s118, %s132
    %p134 = scmp.eq.s32.totalorder %s19, 0
    %p135 = por %p133, %p134
    %s137 = sadd.s32 %s136, 1
    %p140 = scmp.eq.s32.totalorder %s13, 1
    %p141 = scmp.ne.s32.totalorder %s136, %s138
    %p142 = scmp.eq.s32.totalorder %s13, 0
    %p143 = por %p141, %p142
    %p144 = scmp.ne.s32.totalorder %s136, %s138
    %p145 = scmp.eq.s32.totalorder %s18, 1
    %p146 = por %p144, %p145
    %p147 = scmp.ne.s32.totalorder %s138, %s139
    %p148 = scmp.eq.s32.totalorder %s18, 0
    %p149 = por %p147, %p148
    %p150 = scmp.ne.s32.totalorder %s138, %s139
    %p151 = scmp.eq.s32.totalorder %s19, 1
    %p152 = por %p150, %p151
    %p154 = scmp.ne.s32.totalorder %s139, %s153
    %p155 = scmp.eq.s32.totalorder %s19, 0
    %p156 = por %p154, %p155
    %s158 = sadd.s32 %s157, 1
    %p161 = scmp.eq.s32.totalorder %s13, 1
    %p162 = scmp.ne.s32.totalorder %s157, %s159
    %p163 = scmp.eq.s32.totalorder %s13, 0
    %p164 = por %p162, %p163
    %p165 = scmp.ne.s32.totalorder %s157, %s159
    %p166 = scmp.eq.s32.totalorder %s18, 1
    %p167 = por %p165, %p166
    %p168 = scmp.ne.s32.totalorder %s159, %s160
    %p169 = scmp.eq.s32.totalorder %s18, 0
    %p170 = por %p168, %p169
    %p171 = scmp.ne.s32.totalorder %s159, %s160
    %p172 = scmp.eq.s32.totalorder %s19, 1
    %p173 = por %p171, %p172
    %p175 = scmp.ne.s32.totalorder %s160, %s174
    %p176 = scmp.eq.s32.totalorder %s19, 0
    %p177 = por %p175, %p176
    %s179 = sadd.s32 %s178, 1
    %p182 = scmp.eq.s32.totalorder %s13, 1
    %p183 = scmp.ne.s32.totalorder %s178, %s180
    %p184 = scmp.eq.s32.totalorder %s13, 0
    %p185 = por %p183, %p184
    %p186 = scmp.ne.s32.totalorder %s178, %s180
    %p187 = scmp.eq.s32.totalorder %s18, 1
    %p188 = por %p186, %p187
    %p189 = scmp.ne.s32.totalorder %s180, %s181
    %p190 = scmp.eq.s32.totalorder %s18, 0
    %p191 = por %p189, %p190
    %p192 = scmp.ne.s32.totalorder %s180, %s181
    %p193 = scmp.eq.s32.totalorder %s19, 1
    %p194 = por %p192, %p193
    %p196 = scmp.ne.s32.totalorder %s181, %s195
    %p197 = scmp.eq.s32.totalorder %s19, 0
    %p198 = por %p196, %p197
    %p199 = scmp.le.s32.totalorder 1, %s13
    %p200 = scmp.lt.s32.totalorder %s13, 3
    %p201 = pnand %p199, %p200
    %p202 = pneg %p201
    // Predicated region
    $region9: #{tag_net_forward.1} parent=5 // pred_check
      _
    $region10: #{tag_net_forward.1} parent=5 // pred_check_branch
      %204 = sbr.rel (%p201) target = $region12
    $region11: #{tag_net_forward.1} parent=5 // pred_region
      %s205 = ssub.s32 %s13, 1
      // Predicated region
      $region13: #{tag_net_forward.1} parent=11 // pred_check
        %p206 = pneg %p34
      $region14: #{tag_net_forward.1} parent=11 // pred_check_branch
        %208 = sbr.rel (%p206) target = $region16
      $region15: #{tag_net_forward.1} parent=11 // pred_region
        _
      $region16: #{tag_net_forward.1} parent=11 // pred_fallthru
        _
      // Predicated region
      $region17: #{tag_net_forward.1} parent=11 // pred_check
        %p209 = pneg %p55
      $region18: #{tag_net_forward.1} parent=11 // pred_check_branch
        %211 = sbr.rel (%p209) target = $region20
      $region19: #{tag_net_forward.1} parent=11 // pred_region
        _
      $region20: #{tag_net_forward.1} parent=11 // pred_fallthru
        _
      // Predicated region
      $region21: #{tag_net_forward.1} parent=11 // pred_check
        %p212 = pneg %p128
      $region22: #{tag_net_forward.1} parent=11 // pred_check_branch
        %214 = sbr.rel (%p212) target = $region24
      $region23: #{tag_net_forward.1} parent=11 // pred_region
        _
      $region24: #{tag_net_forward.1} parent=11 // pred_fallthru
        _
      // Predicated region
      $region25: #{tag_net_forward.1} parent=11 // pred_check
        %p215 = pneg %p149
      $region26: #{tag_net_forward.1} parent=11 // pred_check_branch
        %217 = sbr.rel (%p215) target = $region28
      $region27: #{tag_net_forward.1} parent=11 // pred_region
        _
      $region28: #{tag_net_forward.1} parent=11 // pred_fallthru
        _
      // Predicated region
      $region29: #{tag_net_forward.1} parent=11 // pred_check
        %p218 = pneg %p170
      $region30: #{tag_net_forward.1} parent=11 // pred_check_branch
        %220 = sbr.rel (%p218) target = $region32
      $region31: #{tag_net_forward.1} parent=11 // pred_region
        _
      $region32: #{tag_net_forward.1} parent=11 // pred_fallthru
        _
    $region12: #{tag_net_forward.1} parent=5 // pred_fallthru
      _
    %p221 = scmp.lt.s32.totalorder %s13, 2
    // Predicated region
    $region33: #{tag_net_forward.1} parent=5 // pred_check
      %p222 = pneg %p221
    $region34: #{tag_net_forward.1} parent=5 // pred_check_branch
      %224 = sbr.rel (%p222) target = $region36
    $region35: #{tag_net_forward.1} parent=5 // pred_region
      // Predicated region
      $region37: #{tag_net_forward.1} parent=35 // pred_check
        %p225 = pneg %p75
      $region38: #{tag_net_forward.1} parent=35 // pred_check_branch
        %227 = sbr.rel (%p225) target = $region40
      $region39: #{tag_net_forward.1} parent=35 // pred_region
        %p228 = scmp.lt.s32.totalorder %s13, 1
        %s229 = scalar_select %p228, %s13, 1
        %s230 = smul.addr %s229, 64
        %s231 = smul.addr %s230, 4
        %s232 = scalar_lea.vmem %s2, %s231
      $region40: #{tag_net_forward.1} parent=35 // pred_fallthru
        _
      // Predicated region
      $region41: #{tag_net_forward.1} parent=35 // pred_check
        %p233 = pneg %p101
      $region42: #{tag_net_forward.1} parent=35 // pred_check_branch
        %235 = sbr.rel (%p233) target = $region44
      $region43: #{tag_net_forward.1} parent=35 // pred_region
        %p236 = scmp.lt.s32.totalorder %s13, 1
        %s237 = scalar_select %p236, %s13, 1
        %s238 = scalar_lea.vmem %s3, %s237
      $region44: #{tag_net_forward.1} parent=35 // pred_fallthru
        _
    $region36: #{tag_net_forward.1} parent=5 // pred_fallthru
      _
    %p239 = scmp.le.s32.totalorder 1, %s13
    %p240 = scmp.lt.s32.totalorder %s13, 3
    %p241 = pnand %p239, %p240
    %p242 = pneg %p241
    // Predicated region
    $region45: #{tag_net_forward.1} parent=5 // pred_check
      _
    $region46: #{tag_net_forward.1} parent=5 // pred_check_branch
      %244 = sbr.rel (%p241) target = $region48
    $region47: #{tag_net_forward.1} parent=5 // pred_region
      %s245 = ssub.s32 %s13, 1
      %p246 = pneg %p34
      %p247 = pneg %p31
      %p248 = pneg %p55
      %p249 = pneg %p52
      %p250 = scmp.lt.s32.totalorder %s18, 1
      %s251 = scalar_select %p250, %s18, 1
      %s252 = smul.addr %s251, 64
      %s253 = smul.addr %s252, 4
      %s254 = scalar_lea.vmem %s2, %s253
      %p255 = pneg %p81
      %p256 = pneg %p78
      %p257 = scmp.lt.s32.totalorder %s18, 1
      %s258 = scalar_select %p257, %s18, 1
      %s259 = scalar_lea.vmem %s3, %s258
      %p260 = pneg %p107
      %p261 = pneg %p104
      %p262 = pneg %p128
      %p263 = pneg %p125
      %p264 = pneg %p149
      %p265 = pneg %p146
      %p266 = pneg %p170
      %p267 = pneg %p167
      %p268 = pneg %p191
      %p269 = pneg %p188
      %p270 = scmp.lt.s32.totalorder %s18, 1
      %s271 = scalar_select %p270, %s18, 1
      %s272 = smul.addr %s271, 64
      %s273 = smul.addr %s272, 4
      %s274 = scalar_lea.vmem %s2, %s273
      %p275 = scmp.lt.s32.totalorder %s18, 1
      %s276 = scalar_select %p275, %s18, 1
      %s277 = scalar_lea.vmem %s3, %s276
      %p279 = scmp.eq.s32.totalorder %s18, 0
      // Predicated region
      $region49: #{tag_net_forward.1} parent=47 // pred_check
        %p280 = pneg %p279
      $region50: #{tag_net_forward.1} parent=47 // pred_check_branch
        %282 = sbr.rel (%p280) target = $region52
      $region51: #{tag_net_forward.1} parent=47 // pred_region
        %v283 = vld [vmem:[%s0] sm:$0xff]
        %v284 = vld [vmem:[%s0 + $0x8] sm:$0xff]
        %v285 = vld [vmem:[%s0 + $0x10] sm:$0xff]
        %v286 = vld [vmem:[%s0 + $0x18] sm:$0xff]
        %v287 = vld [vmem:[%s0 + $0x20] sm:$0xff]
        %v288 = vld [vmem:[%s0 + $0x28] sm:$0xff]
        %v289 = vld [vmem:[%s0 + $0x30] sm:$0xff]
        %v290 = vld [vmem:[%s0 + $0x38] sm:$0xff]
        %v291 = vld [vmem:[%s0 + $0x40] sm:$0xff]
        %v292 = vld [vmem:[%s0 + $0x48] sm:$0xff]
        %v293 = vld [vmem:[%s0 + $0x50] sm:$0xff]
        %v294 = vld [vmem:[%s0 + $0x58] sm:$0xff]
        %v295 = vld [vmem:[%s0 + $0x60] sm:$0xff]
        %v296 = vld [vmem:[%s0 + $0x68] sm:$0xff]
        %v297 = vld [vmem:[%s0 + $0x70] sm:$0xff]
        %v298 = vld [vmem:[%s0 + $0x78] sm:$0xff]
        %299 = vst [vmem:[#allocation2] sm:$0xff] %v283
        %300 = vst [vmem:[#allocation2 + $0x8] sm:$0xff] %v284
        %301 = vst [vmem:[#allocation2 + $0x10] sm:$0xff] %v285
        %302 = vst [vmem:[#allocation2 + $0x18] sm:$0xff] %v286
        %303 = vst [vmem:[#allocation2 + $0x20] sm:$0xff] %v287
        %304 = vst [vmem:[#allocation2 + $0x28] sm:$0xff] %v288
        %305 = vst [vmem:[#allocation2 + $0x30] sm:$0xff] %v289
        %306 = vst [vmem:[#allocation2 + $0x38] sm:$0xff] %v290
        %307 = vst [vmem:[#allocation2 + $0x40] sm:$0xff] %v291
        %308 = vst [vmem:[#allocation2 + $0x48] sm:$0xff] %v292
        %309 = vst [vmem:[#allocation2 + $0x50] sm:$0xff] %v293
        %310 = vst [vmem:[#allocation2 + $0x58] sm:$0xff] %v294
        %311 = vst [vmem:[#allocation2 + $0x60] sm:$0xff] %v295
        %312 = vst [vmem:[#allocation2 + $0x68] sm:$0xff] %v296
        %313 = vst [vmem:[#allocation2 + $0x70] sm:$0xff] %v297
        %314 = vst [vmem:[#allocation2 + $0x78] sm:$0xff] %v298
      $region52: #{tag_net_forward.1} parent=47 // pred_fallthru
        _
      %v315 = vld [vmem:[#allocation2] sm:$0xff]
      %v316 = vld [vmem:[#allocation2 + $0x8] sm:$0xff]
      %v317 = vld [vmem:[#allocation2 + $0x10] sm:$0xff]
      %v318 = vld [vmem:[#allocation2 + $0x18] sm:$0xff]
      %v319 = vld [vmem:[#allocation2 + $0x20] sm:$0xff]
      %v320 = vld [vmem:[#allocation2 + $0x28] sm:$0xff]
      %v321 = vld [vmem:[#allocation2 + $0x30] sm:$0xff]
      %v322 = vld [vmem:[#allocation2 + $0x38] sm:$0xff]
      %v323 = vld [vmem:[#allocation2 + $0x40] sm:$0xff]
      %v324 = vld [vmem:[#allocation2 + $0x48] sm:$0xff]
      %v325 = vld [vmem:[#allocation2 + $0x50] sm:$0xff]
      %v326 = vld [vmem:[#allocation2 + $0x58] sm:$0xff]
      %v327 = vld [vmem:[#allocation2 + $0x60] sm:$0xff]
      %v328 = vld [vmem:[#allocation2 + $0x68] sm:$0xff]
      %v329 = vld [vmem:[#allocation2 + $0x70] sm:$0xff]
      %v330 = vld [vmem:[#allocation2 + $0x78] sm:$0xff]
      %v331 = vld [vmem:[%s1] sm:$0xf]
      %v332 = vld [vmem:[%s1 + $0x4] sm:$0xf]
      %v333 = vld [vmem:[%s1 + $0x8] sm:$0xf]
      %v334 = vld [vmem:[%s1 + $0xc] sm:$0xf]
      %v335 = vld [vmem:[%s1 + $0x10] sm:$0xf]
      %v336 = vld [vmem:[%s1 + $0x14] sm:$0xf]
      %v337 = vld [vmem:[%s1 + $0x18] sm:$0xf]
      %v338 = vld [vmem:[%s1 + $0x1c] sm:$0xf]
      %v339 = vld [vmem:[%s1 + $0x20] sm:$0xf]
      %v340 = vld [vmem:[%s1 + $0x24] sm:$0xf]
      %v341 = vld [vmem:[%s1 + $0x28] sm:$0xf]
      %v342 = vld [vmem:[%s1 + $0x2c] sm:$0xf]
      %v343 = vld [vmem:[%s1 + $0x30] sm:$0xf]
      %v344 = vld [vmem:[%s1 + $0x34] sm:$0xf]
      %v345 = vld [vmem:[%s1 + $0x38] sm:$0xf]
      %v346 = vld [vmem:[%s1 + $0x3c] sm:$0xf]
      %v347 = vpack.c.bf16 %v316, %v315
      %v348 = vpack.c.bf16 %v318, %v317
      %v349 = vpack.c.bf16 %v320, %v319
      %v350 = vpack.c.bf16 %v322, %v321
      %v351 = vpack.c.bf16 %v324, %v323
      %v352 = vpack.c.bf16 %v326, %v325
      %v353 = vpack.c.bf16 %v328, %v327
      %v354 = vpack.c.bf16 %v330, %v329
      %v363 = vunpack.c.l.b16 %v347
      %v364 = vunpack.c.h.b16 %v347
      %v365 = vunpack.c.l.b16 %v348
      %v366 = vunpack.c.h.b16 %v348
      %v367 = vunpack.c.l.b16 %v349
      %v368 = vunpack.c.h.b16 %v349
      %v369 = vunpack.c.l.b16 %v350
      %v370 = vunpack.c.h.b16 %v350
      %v371 = vunpack.c.l.b16 %v351
      %v372 = vunpack.c.h.b16 %v351
      %v373 = vunpack.c.l.b16 %v352
      %v374 = vunpack.c.h.b16 %v352
      %v375 = vunpack.c.l.b16 %v353
      %v376 = vunpack.c.h.b16 %v353
      %v377 = vunpack.c.l.b16 %v354
      %v378 = vunpack.c.h.b16 %v354
      %v379 = vpack.c.b16 %v363, %v363
      %v380 = vpack.c.b16 %v364, %v364
      %v381 = vpack.c.b16 %v365, %v365
      %v382 = vpack.c.b16 %v366, %v366
      %v383 = vpack.c.b16 %v367, %v367
      %v384 = vpack.c.b16 %v368, %v368
      %v385 = vpack.c.b16 %v369, %v369
      %v386 = vpack.c.b16 %v370, %v370
      %v387 = vpack.c.b16 %v371, %v371
      %v388 = vpack.c.b16 %v372, %v372
      %v389 = vpack.c.b16 %v373, %v373
      %v390 = vpack.c.b16 %v374, %v374
      %v391 = vpack.c.b16 %v375, %v375
      %v392 = vpack.c.b16 %v376, %v376
      %v393 = vpack.c.b16 %v377, %v377
      %v394 = vpack.c.b16 %v378, %v378
      %411 = vst [vmem:[#allocation3] sm:$0xf] %v379
      %412 = vst [vmem:[#allocation3 + $0x10] sm:$0xf] %v380
      %413 = vst [vmem:[#allocation3 + $0x20] sm:$0xf] %v381
      %414 = vst [vmem:[#allocation3 + $0x30] sm:$0xf] %v382
      %415 = vst [vmem:[#allocation3 + $0x40] sm:$0xf] %v383
      %416 = vst [vmem:[#allocation3 + $0x50] sm:$0xf] %v384
      %417 = vst [vmem:[#allocation3 + $0x60] sm:$0xf] %v385
      %418 = vst [vmem:[#allocation3 + $0x70] sm:$0xf] %v386
      %419 = vst [vmem:[#allocation3 + $0x80] sm:$0xf] %v387
      %420 = vst [vmem:[#allocation3 + $0x90] sm:$0xf] %v388
      %421 = vst [vmem:[#allocation3 + $0xa0] sm:$0xf] %v389
      %422 = vst [vmem:[#allocation3 + $0xb0] sm:$0xf] %v390
      %423 = vst [vmem:[#allocation3 + $0xc0] sm:$0xf] %v391
      %424 = vst [vmem:[#allocation3 + $0xd0] sm:$0xf] %v392
      %425 = vst [vmem:[#allocation3 + $0xe0] sm:$0xf] %v393
      %426 = vst [vmem:[#allocation3 + $0xf0] sm:$0xf] %v394
      %v443 = vunpack.c.l.b16 %v331
      %v444 = vunpack.c.l.b16 %v332
      %v445 = vunpack.c.l.b16 %v333
      %v446 = vunpack.c.l.b16 %v334
      %v447 = vunpack.c.l.b16 %v335
      %v448 = vunpack.c.l.b16 %v336
      %v449 = vunpack.c.l.b16 %v337
      %v450 = vunpack.c.l.b16 %v338
      %v451 = vunpack.c.l.b16 %v339
      %v452 = vunpack.c.l.b16 %v340
      %v453 = vunpack.c.l.b16 %v341
      %v454 = vunpack.c.l.b16 %v342
      %v455 = vunpack.c.l.b16 %v343
      %v456 = vunpack.c.l.b16 %v344
      %v457 = vunpack.c.l.b16 %v345
      %v458 = vunpack.c.l.b16 %v346
      %v459 = vpack.c.b16 %v444, %v443
      %v460 = vpack.c.b16 %v446, %v445
      %v461 = vpack.c.b16 %v448, %v447
      %v462 = vpack.c.b16 %v450, %v449
      %v463 = vpack.c.b16 %v452, %v451
      %v464 = vpack.c.b16 %v454, %v453
      %v465 = vpack.c.b16 %v456, %v455
      %v466 = vpack.c.b16 %v458, %v457
      %475 = vmatprep.subr.bf16.mxu0 0
      %476 = vmatpush1.bf16.msra.mxu0 %v354
      %477 = vmatprep.subr.bf16.mxu0 0
      %478 = vmatpush1.bf16.msra.mxu0 %v353
      %479 = vmatprep.subr.bf16.mxu0 0
      %480 = vmatpush1.bf16.msra.mxu0 %v352
      %481 = vmatprep.subr.bf16.mxu0 0
      %482 = vmatpush1.bf16.msra.mxu0 %v351
      %483 = vmatprep.subr.bf16.mxu0 0
      %484 = vmatpush1.bf16.msra.mxu0 %v350
      %485 = vmatprep.subr.bf16.mxu0 0
      %486 = vmatpush1.bf16.msra.mxu0 %v349
      %487 = vmatprep.subr.bf16.mxu0 0
      %488 = vmatpush1.bf16.msra.mxu0 %v348
      %489 = vmatprep.subr.bf16.mxu0 0
      %490 = vmatpush1.bf16.msra.mxu0 %v347
      %491 = vmatprep.subr.bf16.mxu0 0
      %492 = vmatpush2.bf16.msra.mxu0 0
      %493 = vmatprep.subr.bf16.mxu0 0
      %494 = vmatpush2.bf16.msra.mxu0 0
      %495 = vmatprep.subr.bf16.mxu0 0
      %496 = vmatpush2.bf16.msra.mxu0 0
      %497 = vmatprep.subr.bf16.mxu0 0
      %498 = vmatpush2.bf16.msra.mxu0 0
      %499 = vmatprep.subr.bf16.mxu0 0
      %500 = vmatpush2.bf16.msra.mxu0 0
      %501 = vmatprep.subr.bf16.mxu0 0
      %502 = vmatpush2.bf16.msra.mxu0 0
      %503 = vmatprep.subr.bf16.mxu0 0
      %504 = vmatpush2.bf16.msra.mxu0 0
      %505 = vmatprep.subr.bf16.mxu0 0
      %506 = vmatpush2.bf16.msra.mxu0 0
      %507 = vmatprep.mubr.bf16.mxu0 0
      %508 = vmatmul.mubr.bf16.gmra.mxu0 %v459
      %v509 = vpop.f32.mrf.mxu0
      %v510 = vadd.f32 0.0, %v509
      %v511 = vpop.f32.mrf.mxu0
      %v512 = vpop.f32.mrf.mxu0
      %v513 = vadd.f32 0.0, %v512
      %v514 = vpop.f32.mrf.mxu0
      %515 = vmatprep.mubr.bf16.mxu0 0
      %516 = vmatmul.mubr.bf16.gmra.mxu0 %v460
      %v517 = vpop.f32.mrf.mxu0
      %v518 = vadd.f32 0.0, %v517
      %v519 = vpop.f32.mrf.mxu0
      %v520 = vpop.f32.mrf.mxu0
      %v521 = vadd.f32 0.0, %v520
      %v522 = vpop.f32.mrf.mxu0
      %523 = vmatprep.mubr.bf16.mxu0 0
      %524 = vmatmul.mubr.bf16.gmra.mxu0 %v461
      %v525 = vpop.f32.mrf.mxu0
      %v526 = vadd.f32 0.0, %v525
      %v527 = vpop.f32.mrf.mxu0
      %v528 = vpop.f32.mrf.mxu0
      %v529 = vadd.f32 0.0, %v528
      %v530 = vpop.f32.mrf.mxu0
      %531 = vmatprep.mubr.bf16.mxu0 0
      %532 = vmatmul.mubr.bf16.gmra.mxu0 %v462
      %v533 = vpop.f32.mrf.mxu0
      %v534 = vadd.f32 0.0, %v533
      %v535 = vpop.f32.mrf.mxu0
      %v536 = vpop.f32.mrf.mxu0
      %v537 = vadd.f32 0.0, %v536
      %v538 = vpop.f32.mrf.mxu0
      %539 = vmatprep.mubr.bf16.mxu0 0
      %540 = vmatmul.mubr.bf16.gmra.mxu0 %v463
      %v541 = vpop.f32.mrf.mxu0
      %v542 = vadd.f32 0.0, %v541
      %v543 = vpop.f32.mrf.mxu0
      %v544 = vpop.f32.mrf.mxu0
      %v545 = vadd.f32 0.0, %v544
      %v546 = vpop.f32.mrf.mxu0
      %547 = vmatprep.mubr.bf16.mxu0 0
      %548 = vmatmul.mubr.bf16.gmra.mxu0 %v464
      %v549 = vpop.f32.mrf.mxu0
      %v550 = vadd.f32 0.0, %v549
      %v551 = vpop.f32.mrf.mxu0
      %v552 = vpop.f32.mrf.mxu0
      %v553 = vadd.f32 0.0, %v552
      %v554 = vpop.f32.mrf.mxu0
      %555 = vmatprep.mubr.bf16.mxu0 0
      %556 = vmatmul.mubr.bf16.gmra.mxu0 %v465
      %v557 = vpop.f32.mrf.mxu0
      %v558 = vadd.f32 0.0, %v557
      %v559 = vpop.f32.mrf.mxu0
      %v560 = vpop.f32.mrf.mxu0
      %v561 = vadd.f32 0.0, %v560
      %v562 = vpop.f32.mrf.mxu0
      %563 = vmatprep.mubr.bf16.mxu0 0
      %564 = vmatmul.mubr.bf16.gmra.mxu0 %v466
      %v565 = vpop.f32.mrf.mxu0
      %v566 = vadd.f32 0.0, %v565
      %v567 = vpop.f32.mrf.mxu0
      %v568 = vpop.f32.mrf.mxu0
      %v569 = vadd.f32 0.0, %v568
      %v570 = vpop.f32.mrf.mxu0
      %571 = vdwg.mxu0
      %v572 = vpack.c.bf16 %v513, %v510
      %v573 = vpack.c.bf16 %v521, %v518
      %v574 = vpack.c.bf16 %v529, %v526
      %v575 = vpack.c.bf16 %v537, %v534
      %v576 = vpack.c.bf16 %v545, %v542
      %v577 = vpack.c.bf16 %v553, %v550
      %v578 = vpack.c.bf16 %v561, %v558
      %v579 = vpack.c.bf16 %v569, %v566
      %v588 = vunpack.c.l.b16 %v572
      %v589 = vunpack.c.h.b16 %v572
      %v590 = vunpack.c.l.b16 %v573
      %v591 = vunpack.c.h.b16 %v573
      %v592 = vunpack.c.l.b16 %v574
      %v593 = vunpack.c.h.b16 %v574
      %v594 = vunpack.c.l.b16 %v575
      %v595 = vunpack.c.h.b16 %v575
      %v596 = vunpack.c.l.b16 %v576
      %v597 = vunpack.c.h.b16 %v576
      %v598 = vunpack.c.l.b16 %v577
      %v599 = vunpack.c.h.b16 %v577
      %v600 = vunpack.c.l.b16 %v578
      %v601 = vunpack.c.h.b16 %v578
      %v602 = vunpack.c.l.b16 %v579
      %v603 = vunpack.c.h.b16 %v579
      %v604 = vpack.c.b16 %v588, %v588
      %v605 = vpack.c.b16 %v589, %v589
      %v606 = vpack.c.b16 %v590, %v590
      %v607 = vpack.c.b16 %v591, %v591
      %v608 = vpack.c.b16 %v592, %v592
      %v609 = vpack.c.b16 %v593, %v593
      %v610 = vpack.c.b16 %v594, %v594
      %v611 = vpack.c.b16 %v595, %v595
      %v612 = vpack.c.b16 %v596, %v596
      %v613 = vpack.c.b16 %v597, %v597
      %v614 = vpack.c.b16 %v598, %v598
      %v615 = vpack.c.b16 %v599, %v599
      %v616 = vpack.c.b16 %v600, %v600
      %v617 = vpack.c.b16 %v601, %v601
      %v618 = vpack.c.b16 %v602, %v602
      %v619 = vpack.c.b16 %v603, %v603
      %636 = vst [vmem:[#allocation3 + $0x4] sm:$0xf] %v604
      %637 = vst [vmem:[#allocation3 + $0x14] sm:$0xf] %v605
      %638 = vst [vmem:[#allocation3 + $0x24] sm:$0xf] %v606
      %639 = vst [vmem:[#allocation3 + $0x34] sm:$0xf] %v607
      %640 = vst [vmem:[#allocation3 + $0x44] sm:$0xf] %v608
      %641 = vst [vmem:[#allocation3 + $0x54] sm:$0xf] %v609
      %642 = vst [vmem:[#allocation3 + $0x64] sm:$0xf] %v610
      %643 = vst [vmem:[#allocation3 + $0x74] sm:$0xf] %v611
      %644 = vst [vmem:[#allocation3 + $0x84] sm:$0xf] %v612
      %645 = vst [vmem:[#allocation3 + $0x94] sm:$0xf] %v613
      %646 = vst [vmem:[#allocation3 + $0xa4] sm:$0xf] %v614
      %647 = vst [vmem:[#allocation3 + $0xb4] sm:$0xf] %v615
      %648 = vst [vmem:[#allocation3 + $0xc4] sm:$0xf] %v616
      %649 = vst [vmem:[#allocation3 + $0xd4] sm:$0xf] %v617
      %650 = vst [vmem:[#allocation3 + $0xe4] sm:$0xf] %v618
      %651 = vst [vmem:[#allocation3 + $0xf4] sm:$0xf] %v619
      %652 = vmatprep.subr.bf16.mxu0 0
      %653 = vmatpush1.bf16.msra.mxu0 %v579
      %654 = vmatprep.subr.bf16.mxu0 0
      %655 = vmatpush1.bf16.msra.mxu0 %v578
      %656 = vmatprep.subr.bf16.mxu0 0
      %657 = vmatpush1.bf16.msra.mxu0 %v577
      %658 = vmatprep.subr.bf16.mxu0 0
      %659 = vmatpush1.bf16.msra.mxu0 %v576
      %660 = vmatprep.subr.bf16.mxu0 0
      %661 = vmatpush1.bf16.msra.mxu0 %v575
      %662 = vmatprep.subr.bf16.mxu0 0
      %663 = vmatpush1.bf16.msra.mxu0 %v574
      %664 = vmatprep.subr.bf16.mxu0 0
      %665 = vmatpush1.bf16.msra.mxu0 %v573
      %666 = vmatprep.subr.bf16.mxu0 0
      %667 = vmatpush1.bf16.msra.mxu0 %v572
      %668 = vmatprep.subr.bf16.mxu0 0
      %669 = vmatpush2.bf16.msra.mxu0 0
      %670 = vmatprep.subr.bf16.mxu0 0
      %671 = vmatpush2.bf16.msra.mxu0 0
      %672 = vmatprep.subr.bf16.mxu0 0
      %673 = vmatpush2.bf16.msra.mxu0 0
      %674 = vmatprep.subr.bf16.mxu0 0
      %675 = vmatpush2.bf16.msra.mxu0 0
      %676 = vmatprep.subr.bf16.mxu0 0
      %677 = vmatpush2.bf16.msra.mxu0 0
      %678 = vmatprep.subr.bf16.mxu0 0
      %679 = vmatpush2.bf16.msra.mxu0 0
      %680 = vmatprep.subr.bf16.mxu0 0
      %681 = vmatpush2.bf16.msra.mxu0 0
      %682 = vmatprep.subr.bf16.mxu0 0
      %683 = vmatpush2.bf16.msra.mxu0 0
      %684 = vmatprep.mubr.bf16.mxu0 0
      %685 = vmatmul.mubr.bf16.gmra.mxu0 %v459
      %v686 = vpop.f32.mrf.mxu0
      %v687 = vadd.f32 0.0, %v686
      %v688 = vpop.f32.mrf.mxu0
      %v689 = vpop.f32.mrf.mxu0
      %v690 = vadd.f32 0.0, %v689
      %v691 = vpop.f32.mrf.mxu0
      %692 = vmatprep.mubr.bf16.mxu0 0
      %693 = vmatmul.mubr.bf16.gmra.mxu0 %v460
      %v694 = vpop.f32.mrf.mxu0
      %v695 = vadd.f32 0.0, %v694
      %v696 = vpop.f32.mrf.mxu0
      %v697 = vpop.f32.mrf.mxu0
      %v698 = vadd.f32 0.0, %v697
      %v699 = vpop.f32.mrf.mxu0
      %700 = vmatprep.mubr.bf16.mxu0 0
      %701 = vmatmul.mubr.bf16.gmra.mxu0 %v461
      %v702 = vpop.f32.mrf.mxu0
      %v703 = vadd.f32 0.0, %v702
      %v704 = vpop.f32.mrf.mxu0
      %v705 = vpop.f32.mrf.mxu0
      %v706 = vadd.f32 0.0, %v705
      %v707 = vpop.f32.mrf.mxu0
      %708 = vmatprep.mubr.bf16.mxu0 0
      %709 = vmatmul.mubr.bf16.gmra.mxu0 %v462
      %v710 = vpop.f32.mrf.mxu0
      %v711 = vadd.f32 0.0, %v710
      %v712 = vpop.f32.mrf.mxu0
      %v713 = vpop.f32.mrf.mxu0
      %v714 = vadd.f32 0.0, %v713
      %v715 = vpop.f32.mrf.mxu0
      %716 = vmatprep.mubr.bf16.mxu0 0
      %717 = vmatmul.mubr.bf16.gmra.mxu0 %v463
      %v718 = vpop.f32.mrf.mxu0
      %v719 = vadd.f32 0.0, %v718
      %v720 = vpop.f32.mrf.mxu0
      %v721 = vpop.f32.mrf.mxu0
      %v722 = vadd.f32 0.0, %v721
      %v723 = vpop.f32.mrf.mxu0
      %724 = vmatprep.mubr.bf16.mxu0 0
      %725 = vmatmul.mubr.bf16.gmra.mxu0 %v464
      %v726 = vpop.f32.mrf.mxu0
      %v727 = vadd.f32 0.0, %v726
      %v728 = vpop.f32.mrf.mxu0
      %v729 = vpop.f32.mrf.mxu0
      %v730 = vadd.f32 0.0, %v729
      %v731 = vpop.f32.mrf.mxu0
      %732 = vmatprep.mubr.bf16.mxu0 0
      %733 = vmatmul.mubr.bf16.gmra.mxu0 %v465
      %v734 = vpop.f32.mrf.mxu0
      %v735 = vadd.f32 0.0, %v734
      %v736 = vpop.f32.mrf.mxu0
      %v737 = vpop.f32.mrf.mxu0
      %v738 = vadd.f32 0.0, %v737
      %v739 = vpop.f32.mrf.mxu0
      %740 = vmatprep.mubr.bf16.mxu0 0
      %741 = vmatmul.mubr.bf16.gmra.mxu0 %v466
      %v742 = vpop.f32.mrf.mxu0
      %v743 = vadd.f32 0.0, %v742
      %v744 = vpop.f32.mrf.mxu0
      %v745 = vpop.f32.mrf.mxu0
      %v746 = vadd.f32 0.0, %v745
      %v747 = vpop.f32.mrf.mxu0
      %748 = vdwg.mxu0
      %v749 = vpack.c.bf16 %v690, %v687
      %v750 = vpack.c.bf16 %v698, %v695
      %v751 = vpack.c.bf16 %v706, %v703
      %v752 = vpack.c.bf16 %v714, %v711
      %v753 = vpack.c.bf16 %v722, %v719
      %v754 = vpack.c.bf16 %v730, %v727
      %v755 = vpack.c.bf16 %v738, %v735
      %v756 = vpack.c.bf16 %v746, %v743
      %v765 = vunpack.c.l.b16 %v749
      %v766 = vunpack.c.h.b16 %v749
      %v767 = vunpack.c.l.b16 %v750
      %v768 = vunpack.c.h.b16 %v750
      %v769 = vunpack.c.l.b16 %v751
      %v770 = vunpack.c.h.b16 %v751
      %v771 = vunpack.c.l.b16 %v752
      %v772 = vunpack.c.h.b16 %v752
      %v773 = vunpack.c.l.b16 %v753
      %v774 = vunpack.c.h.b16 %v753
      %v775 = vunpack.c.l.b16 %v754
      %v776 = vunpack.c.h.b16 %v754
      %v777 = vunpack.c.l.b16 %v755
      %v778 = vunpack.c.h.b16 %v755
      %v779 = vunpack.c.l.b16 %v756
      %v780 = vunpack.c.h.b16 %v756
      %v781 = vpack.c.b16 %v765, %v765
      %v782 = vpack.c.b16 %v766, %v766
      %v783 = vpack.c.b16 %v767, %v767
      %v784 = vpack.c.b16 %v768, %v768
      %v785 = vpack.c.b16 %v769, %v769
      %v786 = vpack.c.b16 %v770, %v770
      %v787 = vpack.c.b16 %v771, %v771
      %v788 = vpack.c.b16 %v772, %v772
      %v789 = vpack.c.b16 %v773, %v773
      %v790 = vpack.c.b16 %v774, %v774
      %v791 = vpack.c.b16 %v775, %v775
      %v792 = vpack.c.b16 %v776, %v776
      %v793 = vpack.c.b16 %v777, %v777
      %v794 = vpack.c.b16 %v778, %v778
      %v795 = vpack.c.b16 %v779, %v779
      %v796 = vpack.c.b16 %v780, %v780
      %813 = vst [vmem:[#allocation3 + $0x8] sm:$0xf] %v781
      %814 = vst [vmem:[#allocation3 + $0x18] sm:$0xf] %v782
      %815 = vst [vmem:[#allocation3 + $0x28] sm:$0xf] %v783
      %816 = vst [vmem:[#allocation3 + $0x38] sm:$0xf] %v784
      %817 = vst [vmem:[#allocation3 + $0x48] sm:$0xf] %v785
      %818 = vst [vmem:[#allocation3 + $0x58] sm:$0xf] %v786
      %819 = vst [vmem:[#allocation3 + $0x68] sm:$0xf] %v787
      %820 = vst [vmem:[#allocation3 + $0x78] sm:$0xf] %v788
      %821 = vst [vmem:[#allocation3 + $0x88] sm:$0xf] %v789
      %822 = vst [vmem:[#allocation3 + $0x98] sm:$0xf] %v790
      %823 = vst [vmem:[#allocation3 + $0xa8] sm:$0xf] %v791
      %824 = vst [vmem:[#allocation3 + $0xb8] sm:$0xf] %v792
      %825 = vst [vmem:[#allocation3 + $0xc8] sm:$0xf] %v793
      %826 = vst [vmem:[#allocation3 + $0xd8] sm:$0xf] %v794
      %827 = vst [vmem:[#allocation3 + $0xe8] sm:$0xf] %v795
      %828 = vst [vmem:[#allocation3 + $0xf8] sm:$0xf] %v796
      %829 = vmatprep.subr.bf16.mxu0 0
      %830 = vmatpush1.bf16.msra.mxu0 %v756
      %831 = vmatprep.subr.bf16.mxu0 0
      %832 = vmatpush1.bf16.msra.mxu0 %v755
      %833 = vmatprep.subr.bf16.mxu0 0
      %834 = vmatpush1.bf16.msra.mxu0 %v754
      %835 = vmatprep.subr.bf16.mxu0 0
      %836 = vmatpush1.bf16.msra.mxu0 %v753
      %837 = vmatprep.subr.bf16.mxu0 0
      %838 = vmatpush1.bf16.msra.mxu0 %v752
      %839 = vmatprep.subr.bf16.mxu0 0
      %840 = vmatpush1.bf16.msra.mxu0 %v751
      %841 = vmatprep.subr.bf16.mxu0 0
      %842 = vmatpush1.bf16.msra.mxu0 %v750
      %843 = vmatprep.subr.bf16.mxu0 0
      %844 = vmatpush1.bf16.msra.mxu0 %v749
      %845 = vmatprep.subr.bf16.mxu0 0
      %846 = vmatpush2.bf16.msra.mxu0 0
      %847 = vmatprep.subr.bf16.mxu0 0
      %848 = vmatpush2.bf16.msra.mxu0 0
      %849 = vmatprep.subr.bf16.mxu0 0
      %850 = vmatpush2.bf16.msra.mxu0 0
      %851 = vmatprep.subr.bf16.mxu0 0
      %852 = vmatpush2.bf16.msra.mxu0 0
      %853 = vmatprep.subr.bf16.mxu0 0
      %854 = vmatpush2.bf16.msra.mxu0 0
      %855 = vmatprep.subr.bf16.mxu0 0
      %856 = vmatpush2.bf16.msra.mxu0 0
      %857 = vmatprep.subr.bf16.mxu0 0
      %858 = vmatpush2.bf16.msra.mxu0 0
      %859 = vmatprep.subr.bf16.mxu0 0
      %860 = vmatpush2.bf16.msra.mxu0 0
      %861 = vmatprep.mubr.bf16.mxu0 0
      %862 = vmatmul.mubr.bf16.gmra.mxu0 %v459
      %v863 = vpop.f32.mrf.mxu0
      %v864 = vadd.f32 0.0, %v863
      %v865 = vpop.f32.mrf.mxu0
      %v866 = vpop.f32.mrf.mxu0
      %v867 = vadd.f32 0.0, %v866
      %v868 = vpop.f32.mrf.mxu0
      %869 = vmatprep.mubr.bf16.mxu0 0
      %870 = vmatmul.mubr.bf16.gmra.mxu0 %v460
      %v871 = vpop.f32.mrf.mxu0
      %v872 = vadd.f32 0.0, %v871
      %v873 = vpop.f32.mrf.mxu0
      %v874 = vpop.f32.mrf.mxu0
      %v875 = vadd.f32 0.0, %v874
      %v876 = vpop.f32.mrf.mxu0
      %877 = vmatprep.mubr.bf16.mxu0 0
      %878 = vmatmul.mubr.bf16.gmra.mxu0 %v461
      %v879 = vpop.f32.mrf.mxu0
      %v880 = vadd.f32 0.0, %v879
      %v881 = vpop.f32.mrf.mxu0
      %v882 = vpop.f32.mrf.mxu0
      %v883 = vadd.f32 0.0, %v882
      %v884 = vpop.f32.mrf.mxu0
      %885 = vmatprep.mubr.bf16.mxu0 0
      %886 = vmatmul.mubr.bf16.gmra.mxu0 %v462
      %v887 = vpop.f32.mrf.mxu0
      %v888 = vadd.f32 0.0, %v887
      %v889 = vpop.f32.mrf.mxu0
      %v890 = vpop.f32.mrf.mxu0
      %v891 = vadd.f32 0.0, %v890
      %v892 = vpop.f32.mrf.mxu0
      %893 = vmatprep.mubr.bf16.mxu0 0
      %894 = vmatmul.mubr.bf16.gmra.mxu0 %v463
      %v895 = vpop.f32.mrf.mxu0
      %v896 = vadd.f32 0.0, %v895
      %v897 = vpop.f32.mrf.mxu0
      %v898 = vpop.f32.mrf.mxu0
      %v899 = vadd.f32 0.0, %v898
      %v900 = vpop.f32.mrf.mxu0
      %901 = vmatprep.mubr.bf16.mxu0 0
      %902 = vmatmul.mubr.bf16.gmra.mxu0 %v464
      %v903 = vpop.f32.mrf.mxu0
      %v904 = vadd.f32 0.0, %v903
      %v905 = vpop.f32.mrf.mxu0
      %v906 = vpop.f32.mrf.mxu0
      %v907 = vadd.f32 0.0, %v906
      %v908 = vpop.f32.mrf.mxu0
      %909 = vmatprep.mubr.bf16.mxu0 0
      %910 = vmatmul.mubr.bf16.gmra.mxu0 %v465
      %v911 = vpop.f32.mrf.mxu0
      %v912 = vadd.f32 0.0, %v911
      %v913 = vpop.f32.mrf.mxu0
      %v914 = vpop.f32.mrf.mxu0
      %v915 = vadd.f32 0.0, %v914
      %v916 = vpop.f32.mrf.mxu0
      %917 = vmatprep.mubr.bf16.mxu0 0
      %918 = vmatmul.mubr.bf16.gmra.mxu0 %v466
      %v919 = vpop.f32.mrf.mxu0
      %v920 = vadd.f32 0.0, %v919
      %v921 = vpop.f32.mrf.mxu0
      %v922 = vpop.f32.mrf.mxu0
      %v923 = vadd.f32 0.0, %v922
      %v924 = vpop.f32.mrf.mxu0
      %925 = vdwg.mxu0
      %v926 = vpack.c.bf16 %v867, %v864
      %v927 = vpack.c.bf16 %v875, %v872
      %v928 = vpack.c.bf16 %v883, %v880
      %v929 = vpack.c.bf16 %v891, %v888
      %v930 = vpack.c.bf16 %v899, %v896
      %v931 = vpack.c.bf16 %v907, %v904
      %v932 = vpack.c.bf16 %v915, %v912
      %v933 = vpack.c.bf16 %v923, %v920
      %v942 = vunpack.c.l.b16 %v926
      %v943 = vunpack.c.h.b16 %v926
      %v944 = vunpack.c.l.b16 %v927
      %v945 = vunpack.c.h.b16 %v927
      %v946 = vunpack.c.l.b16 %v928
      %v947 = vunpack.c.h.b16 %v928
      %v948 = vunpack.c.l.b16 %v929
      %v949 = vunpack.c.h.b16 %v929
      %v950 = vunpack.c.l.b16 %v930
      %v951 = vunpack.c.h.b16 %v930
      %v952 = vunpack.c.l.b16 %v931
      %v953 = vunpack.c.h.b16 %v931
      %v954 = vunpack.c.l.b16 %v932
      %v955 = vunpack.c.h.b16 %v932
      %v956 = vunpack.c.l.b16 %v933
      %v957 = vunpack.c.h.b16 %v933
      %v958 = vpack.c.b16 %v942, %v942
      %v959 = vpack.c.b16 %v943, %v943
      %v960 = vpack.c.b16 %v944, %v944
      %v961 = vpack.c.b16 %v945, %v945
      %v962 = vpack.c.b16 %v946, %v946
      %v963 = vpack.c.b16 %v947, %v947
      %v964 = vpack.c.b16 %v948, %v948
      %v965 = vpack.c.b16 %v949, %v949
      %v966 = vpack.c.b16 %v950, %v950
      %v967 = vpack.c.b16 %v951, %v951
      %v968 = vpack.c.b16 %v952, %v952
      %v969 = vpack.c.b16 %v953, %v953
      %v970 = vpack.c.b16 %v954, %v954
      %v971 = vpack.c.b16 %v955, %v955
      %v972 = vpack.c.b16 %v956, %v956
      %v973 = vpack.c.b16 %v957, %v957
      %990 = vst [vmem:[#allocation3 + $0xc] sm:$0xf] %v958
      %991 = vst [vmem:[#allocation3 + $0x1c] sm:$0xf] %v959
      %992 = vst [vmem:[#allocation3 + $0x2c] sm:$0xf] %v960
      %993 = vst [vmem:[#allocation3 + $0x3c] sm:$0xf] %v961
      %994 = vst [vmem:[#allocation3 + $0x4c] sm:$0xf] %v962
      %995 = vst [vmem:[#allocation3 + $0x5c] sm:$0xf] %v963
      %996 = vst [vmem:[#allocation3 + $0x6c] sm:$0xf] %v964
      %997 = vst [vmem:[#allocation3 + $0x7c] sm:$0xf] %v965
      %998 = vst [vmem:[#allocation3 + $0x8c] sm:$0xf] %v966
      %999 = vst [vmem:[#allocation3 + $0x9c] sm:$0xf] %v967
      %1000 = vst [vmem:[#allocation3 + $0xac] sm:$0xf] %v968
      %1001 = vst [vmem:[#allocation3 + $0xbc] sm:$0xf] %v969
      %1002 = vst [vmem:[#allocation3 + $0xcc] sm:$0xf] %v970
      %1003 = vst [vmem:[#allocation3 + $0xdc] sm:$0xf] %v971
      %1004 = vst [vmem:[#allocation3 + $0xec] sm:$0xf] %v972
      %1005 = vst [vmem:[#allocation3 + $0xfc] sm:$0xf] %v973
      %v1006 = vld [vmem:[#allocation3] sm:$0xff]
      %v1007 = vld [vmem:[#allocation3 + $0x8] sm:$0xff]
      %v1008 = vld [vmem:[#allocation3 + $0x10] sm:$0xff]
      %v1009 = vld [vmem:[#allocation3 + $0x18] sm:$0xff]
      %v1010 = vld [vmem:[#allocation3 + $0x20] sm:$0xff]
      %v1011 = vld [vmem:[#allocation3 + $0x28] sm:$0xff]
      %v1012 = vld [vmem:[#allocation3 + $0x30] sm:$0xff]
      %v1013 = vld [vmem:[#allocation3 + $0x38] sm:$0xff]
      %v1014 = vld [vmem:[#allocation3 + $0x40] sm:$0xff]
      %v1015 = vld [vmem:[#allocation3 + $0x48] sm:$0xff]
      %v1016 = vld [vmem:[#allocation3 + $0x50] sm:$0xff]
      %v1017 = vld [vmem:[#allocation3 + $0x58] sm:$0xff]
      %v1018 = vld [vmem:[#allocation3 + $0x60] sm:$0xff]
      %v1019 = vld [vmem:[#allocation3 + $0x68] sm:$0xff]
      %v1020 = vld [vmem:[#allocation3 + $0x70] sm:$0xff]
      %v1021 = vld [vmem:[#allocation3 + $0x78] sm:$0xff]
      %v1022 = vld [vmem:[#allocation3 + $0x80] sm:$0xff]
      %v1023 = vld [vmem:[#allocation3 + $0x88] sm:$0xff]
      %v1024 = vld [vmem:[#allocation3 + $0x90] sm:$0xff]
      %v1025 = vld [vmem:[#allocation3 + $0x98] sm:$0xff]
      %v1026 = vld [vmem:[#allocation3 + $0xa0] sm:$0xff]
      %v1027 = vld [vmem:[#allocation3 + $0xa8] sm:$0xff]
      %v1028 = vld [vmem:[#allocation3 + $0xb0] sm:$0xff]
      %v1029 = vld [vmem:[#allocation3 + $0xb8] sm:$0xff]
      %v1030 = vld [vmem:[#allocation3 + $0xc0] sm:$0xff]
      %v1031 = vld [vmem:[#allocation3 + $0xc8] sm:$0xff]
      %v1032 = vld [vmem:[#allocation3 + $0xd0] sm:$0xff]
      %v1033 = vld [vmem:[#allocation3 + $0xd8] sm:$0xff]
      %v1034 = vld [vmem:[#allocation3 + $0xe0] sm:$0xff]
      %v1035 = vld [vmem:[#allocation3 + $0xe8] sm:$0xff]
      %v1036 = vld [vmem:[#allocation3 + $0xf0] sm:$0xff]
      %v1037 = vld [vmem:[#allocation3 + $0xf8] sm:$0xff]
      %v1038 = vld [vmem:[%s274] sm:$0xf]
      %v1039 = vld [vmem:[%s274 + $0x4] sm:$0xf]
      %v1040 = vld [vmem:[%s274 + $0x8] sm:$0xf]
      %v1041 = vld [vmem:[%s274 + $0xc] sm:$0xf]
      %v1042 = vld [vmem:[%s274 + $0x10] sm:$0xf]
      %v1043 = vld [vmem:[%s274 + $0x14] sm:$0xf]
      %v1044 = vld [vmem:[%s274 + $0x18] sm:$0xf]
      %v1045 = vld [vmem:[%s274 + $0x1c] sm:$0xf]
      %v1046 = vld [vmem:[%s274 + $0x20] sm:$0xf]
      %v1047 = vld [vmem:[%s274 + $0x24] sm:$0xf]
      %v1048 = vld [vmem:[%s274 + $0x28] sm:$0xf]
      %v1049 = vld [vmem:[%s274 + $0x2c] sm:$0xf]
      %v1050 = vld [vmem:[%s274 + $0x30] sm:$0xf]
      %v1051 = vld [vmem:[%s274 + $0x34] sm:$0xf]
      %v1052 = vld [vmem:[%s274 + $0x38] sm:$0xf]
      %v1053 = vld [vmem:[%s274 + $0x3c] sm:$0xf]
      %v1054 = vld [vmem:[%s274 + $0x40] sm:$0xf]
      %v1055 = vld [vmem:[%s274 + $0x44] sm:$0xf]
      %v1056 = vld [vmem:[%s274 + $0x48] sm:$0xf]
      %v1057 = vld [vmem:[%s274 + $0x4c] sm:$0xf]
      %v1058 = vld [vmem:[%s274 + $0x50] sm:$0xf]
      %v1059 = vld [vmem:[%s274 + $0x54] sm:$0xf]
      %v1060 = vld [vmem:[%s274 + $0x58] sm:$0xf]
      %v1061 = vld [vmem:[%s274 + $0x5c] sm:$0xf]
      %v1062 = vld [vmem:[%s274 + $0x60] sm:$0xf]
      %v1063 = vld [vmem:[%s274 + $0x64] sm:$0xf]
      %v1064 = vld [vmem:[%s274 + $0x68] sm:$0xf]
      %v1065 = vld [vmem:[%s274 + $0x6c] sm:$0xf]
      %v1066 = vld [vmem:[%s274 + $0x70] sm:$0xf]
      %v1067 = vld [vmem:[%s274 + $0x74] sm:$0xf]
      %v1068 = vld [vmem:[%s274 + $0x78] sm:$0xf]
      %v1069 = vld [vmem:[%s274 + $0x7c] sm:$0xf]
      %v1070 = vld [vmem:[%s274 + $0x80] sm:$0xf]
      %v1071 = vld [vmem:[%s274 + $0x84] sm:$0xf]
      %v1072 = vld [vmem:[%s274 + $0x88] sm:$0xf]
      %v1073 = vld [vmem:[%s274 + $0x8c] sm:$0xf]
      %v1074 = vld [vmem:[%s274 + $0x90] sm:$0xf]
      %v1075 = vld [vmem:[%s274 + $0x94] sm:$0xf]
      %v1076 = vld [vmem:[%s274 + $0x98] sm:$0xf]
      %v1077 = vld [vmem:[%s274 + $0x9c] sm:$0xf]
      %v1078 = vld [vmem:[%s274 + $0xa0] sm:$0xf]
      %v1079 = vld [vmem:[%s274 + $0xa4] sm:$0xf]
      %v1080 = vld [vmem:[%s274 + $0xa8] sm:$0xf]
      %v1081 = vld [vmem:[%s274 + $0xac] sm:$0xf]
      %v1082 = vld [vmem:[%s274 + $0xb0] sm:$0xf]
      %v1083 = vld [vmem:[%s274 + $0xb4] sm:$0xf]
      %v1084 = vld [vmem:[%s274 + $0xb8] sm:$0xf]
      %v1085 = vld [vmem:[%s274 + $0xbc] sm:$0xf]
      %v1086 = vld [vmem:[%s274 + $0xc0] sm:$0xf]
      %v1087 = vld [vmem:[%s274 + $0xc4] sm:$0xf]
      %v1088 = vld [vmem:[%s274 + $0xc8] sm:$0xf]
      %v1089 = vld [vmem:[%s274 + $0xcc] sm:$0xf]
      %v1090 = vld [vmem:[%s274 + $0xd0] sm:$0xf]
      %v1091 = vld [vmem:[%s274 + $0xd4] sm:$0xf]
      %v1092 = vld [vmem:[%s274 + $0xd8] sm:$0xf]
      %v1093 = vld [vmem:[%s274 + $0xdc] sm:$0xf]
      %v1094 = vld [vmem:[%s274 + $0xe0] sm:$0xf]
      %v1095 = vld [vmem:[%s274 + $0xe4] sm:$0xf]
      %v1096 = vld [vmem:[%s274 + $0xe8] sm:$0xf]
      %v1097 = vld [vmem:[%s274 + $0xec] sm:$0xf]
      %v1098 = vld [vmem:[%s274 + $0xf0] sm:$0xf]
      %v1099 = vld [vmem:[%s274 + $0xf4] sm:$0xf]
      %v1100 = vld [vmem:[%s274 + $0xf8] sm:$0xf]
      %v1101 = vld [vmem:[%s274 + $0xfc] sm:$0xf]
      %v1102 = vld [vmem:[%s277] sm:$0x1]
      %v1104 = vlaneseq
      %v1105 = vshrl.u32 %v1104, 7
      %v1106 = vsub.s32 0, %v1105
      %v1107 = vrot.slane %v1102, %v1106
      %v1141 = vunpack.c.l.b16 %v1006
      %v1142 = vunpack.c.h.b16 %v1006
      %v1143 = vunpack.c.l.b16 %v1007
      %v1144 = vunpack.c.h.b16 %v1007
      %v1145 = vunpack.c.l.b16 %v1008
      %v1146 = vunpack.c.h.b16 %v1008
      %v1147 = vunpack.c.l.b16 %v1009
      %v1148 = vunpack.c.h.b16 %v1009
      %v1149 = vunpack.c.l.b16 %v1010
      %v1150 = vunpack.c.h.b16 %v1010
      %v1151 = vunpack.c.l.b16 %v1011
      %v1152 = vunpack.c.h.b16 %v1011
      %v1153 = vunpack.c.l.b16 %v1012
      %v1154 = vunpack.c.h.b16 %v1012
      %v1155 = vunpack.c.l.b16 %v1013
      %v1156 = vunpack.c.h.b16 %v1013
      %v1157 = vunpack.c.l.b16 %v1014
      %v1158 = vunpack.c.h.b16 %v1014
      %v1159 = vunpack.c.l.b16 %v1015
      %v1160 = vunpack.c.h.b16 %v1015
      %v1161 = vunpack.c.l.b16 %v1016
      %v1162 = vunpack.c.h.b16 %v1016
      %v1163 = vunpack.c.l.b16 %v1017
      %v1164 = vunpack.c.h.b16 %v1017
      %v1165 = vunpack.c.l.b16 %v1018
      %v1166 = vunpack.c.h.b16 %v1018
      %v1167 = vunpack.c.l.b16 %v1019
      %v1168 = vunpack.c.h.b16 %v1019
      %v1169 = vunpack.c.l.b16 %v1020
      %v1170 = vunpack.c.h.b16 %v1020
      %v1171 = vunpack.c.l.b16 %v1021
      %v1172 = vunpack.c.h.b16 %v1021
      %v1173 = vunpack.c.l.b16 %v1022
      %v1174 = vunpack.c.h.b16 %v1022
      %v1175 = vunpack.c.l.b16 %v1023
      %v1176 = vunpack.c.h.b16 %v1023
      %v1177 = vunpack.c.l.b16 %v1024
      %v1178 = vunpack.c.h.b16 %v1024
      %v1179 = vunpack.c.l.b16 %v1025
      %v1180 = vunpack.c.h.b16 %v1025
      %v1181 = vunpack.c.l.b16 %v1026
      %v1182 = vunpack.c.h.b16 %v1026
      %v1183 = vunpack.c.l.b16 %v1027
      %v1184 = vunpack.c.h.b16 %v1027
      %v1185 = vunpack.c.l.b16 %v1028
      %v1186 = vunpack.c.h.b16 %v1028
      %v1187 = vunpack.c.l.b16 %v1029
      %v1188 = vunpack.c.h.b16 %v1029
      %v1189 = vunpack.c.l.b16 %v1030
      %v1190 = vunpack.c.h.b16 %v1030
      %v1191 = vunpack.c.l.b16 %v1031
      %v1192 = vunpack.c.h.b16 %v1031
      %v1193 = vunpack.c.l.b16 %v1032
      %v1194 = vunpack.c.h.b16 %v1032
      %v1195 = vunpack.c.l.b16 %v1033
      %v1196 = vunpack.c.h.b16 %v1033
      %v1197 = vunpack.c.l.b16 %v1034
      %v1198 = vunpack.c.h.b16 %v1034
      %v1199 = vunpack.c.l.b16 %v1035
      %v1200 = vunpack.c.h.b16 %v1035
      %v1201 = vunpack.c.l.b16 %v1036
      %v1202 = vunpack.c.h.b16 %v1036
      %v1203 = vunpack.c.l.b16 %v1037
      %v1204 = vunpack.c.h.b16 %v1037
      %v1205 = vpack.c.b16 %v1145, %v1141
      %v1206 = vpack.c.b16 %v1146, %v1142
      %v1207 = vpack.c.b16 %v1147, %v1143
      %v1208 = vpack.c.b16 %v1148, %v1144
      %v1209 = vpack.c.b16 %v1153, %v1149
      %v1210 = vpack.c.b16 %v1154, %v1150
      %v1211 = vpack.c.b16 %v1155, %v1151
      %v1212 = vpack.c.b16 %v1156, %v1152
      %v1213 = vpack.c.b16 %v1161, %v1157
      %v1214 = vpack.c.b16 %v1162, %v1158
      %v1215 = vpack.c.b16 %v1163, %v1159
      %v1216 = vpack.c.b16 %v1164, %v1160
      %v1217 = vpack.c.b16 %v1169, %v1165
      %v1218 = vpack.c.b16 %v1170, %v1166
      %v1219 = vpack.c.b16 %v1171, %v1167
      %v1220 = vpack.c.b16 %v1172, %v1168
      %v1221 = vpack.c.b16 %v1177, %v1173
      %v1222 = vpack.c.b16 %v1178, %v1174
      %v1223 = vpack.c.b16 %v1179, %v1175
      %v1224 = vpack.c.b16 %v1180, %v1176
      %v1225 = vpack.c.b16 %v1185, %v1181
      %v1226 = vpack.c.b16 %v1186, %v1182
      %v1227 = vpack.c.b16 %v1187, %v1183
      %v1228 = vpack.c.b16 %v1188, %v1184
      %v1229 = vpack.c.b16 %v1193, %v1189
      %v1230 = vpack.c.b16 %v1194, %v1190
      %v1231 = vpack.c.b16 %v1195, %v1191
      %v1232 = vpack.c.b16 %v1196, %v1192
      %v1233 = vpack.c.b16 %v1201, %v1197
      %v1234 = vpack.c.b16 %v1202, %v1198
      %v1235 = vpack.c.b16 %v1203, %v1199
      %v1236 = vpack.c.b16 %v1204, %v1200
      %v1333 = vunpack.c.l.b16 %v1038
      %v1334 = vunpack.c.l.b16 %v1039
      %v1335 = vunpack.c.l.b16 %v1040
      %v1336 = vunpack.c.l.b16 %v1041
      %v1337 = vunpack.c.l.b16 %v1042
      %v1338 = vunpack.c.l.b16 %v1043
      %v1339 = vunpack.c.l.b16 %v1044
      %v1340 = vunpack.c.l.b16 %v1045
      %v1341 = vunpack.c.l.b16 %v1046
      %v1342 = vunpack.c.l.b16 %v1047
      %v1343 = vunpack.c.l.b16 %v1048
      %v1344 = vunpack.c.l.b16 %v1049
      %v1345 = vunpack.c.l.b16 %v1050
      %v1346 = vunpack.c.l.b16 %v1051
      %v1347 = vunpack.c.l.b16 %v1052
      %v1348 = vunpack.c.l.b16 %v1053
      %v1349 = vunpack.c.l.b16 %v1054
      %v1350 = vunpack.c.l.b16 %v1055
      %v1351 = vunpack.c.l.b16 %v1056
      %v1352 = vunpack.c.l.b16 %v1057
      %v1353 = vunpack.c.l.b16 %v1058
      %v1354 = vunpack.c.l.b16 %v1059
      %v1355 = vunpack.c.l.b16 %v1060
      %v1356 = vunpack.c.l.b16 %v1061
      %v1357 = vunpack.c.l.b16 %v1062
      %v1358 = vunpack.c.l.b16 %v1063
      %v1359 = vunpack.c.l.b16 %v1064
      %v1360 = vunpack.c.l.b16 %v1065
      %v1361 = vunpack.c.l.b16 %v1066
      %v1362 = vunpack.c.l.b16 %v1067
      %v1363 = vunpack.c.l.b16 %v1068
      %v1364 = vunpack.c.l.b16 %v1069
      %v1365 = vunpack.c.l.b16 %v1070
      %v1366 = vunpack.c.l.b16 %v1071
      %v1367 = vunpack.c.l.b16 %v1072
      %v1368 = vunpack.c.l.b16 %v1073
      %v1369 = vunpack.c.l.b16 %v1074
      %v1370 = vunpack.c.l.b16 %v1075
      %v1371 = vunpack.c.l.b16 %v1076
      %v1372 = vunpack.c.l.b16 %v1077
      %v1373 = vunpack.c.l.b16 %v1078
      %v1374 = vunpack.c.l.b16 %v1079
      %v1375 = vunpack.c.l.b16 %v1080
      %v1376 = vunpack.c.l.b16 %v1081
      %v1377 = vunpack.c.l.b16 %v1082
      %v1378 = vunpack.c.l.b16 %v1083
      %v1379 = vunpack.c.l.b16 %v1084
      %v1380 = vunpack.c.l.b16 %v1085
      %v1381 = vunpack.c.l.b16 %v1086
      %v1382 = vunpack.c.l.b16 %v1087
      %v1383 = vunpack.c.l.b16 %v1088
      %v1384 = vunpack.c.l.b16 %v1089
      %v1385 = vunpack.c.l.b16 %v1090
      %v1386 = vunpack.c.l.b16 %v1091
      %v1387 = vunpack.c.l.b16 %v1092
      %v1388 = vunpack.c.l.b16 %v1093
      %v1389 = vunpack.c.l.b16 %v1094
      %v1390 = vunpack.c.l.b16 %v1095
      %v1391 = vunpack.c.l.b16 %v1096
      %v1392 = vunpack.c.l.b16 %v1097
      %v1393 = vunpack.c.l.b16 %v1098
      %v1394 = vunpack.c.l.b16 %v1099
      %v1395 = vunpack.c.l.b16 %v1100
      %v1396 = vunpack.c.l.b16 %v1101
      %v1397 = vpack.c.b16 %v1334, %v1333
      %v1398 = vpack.c.b16 %v1336, %v1335
      %v1399 = vpack.c.b16 %v1338, %v1337
      %v1400 = vpack.c.b16 %v1340, %v1339
      %v1401 = vpack.c.b16 %v1342, %v1341
      %v1402 = vpack.c.b16 %v1344, %v1343
      %v1403 = vpack.c.b16 %v1346, %v1345
      %v1404 = vpack.c.b16 %v1348, %v1347
      %v1405 = vpack.c.b16 %v1350, %v1349
      %v1406 = vpack.c.b16 %v1352, %v1351
      %v1407 = vpack.c.b16 %v1354, %v1353
      %v1408 = vpack.c.b16 %v1356, %v1355
      %v1409 = vpack.c.b16 %v1358, %v1357
      %v1410 = vpack.c.b16 %v1360, %v1359
      %v1411 = vpack.c.b16 %v1362, %v1361
      %v1412 = vpack.c.b16 %v1364, %v1363
      %v1413 = vpack.c.b16 %v1366, %v1365
      %v1414 = vpack.c.b16 %v1368, %v1367
      %v1415 = vpack.c.b16 %v1370, %v1369
      %v1416 = vpack.c.b16 %v1372, %v1371
      %v1417 = vpack.c.b16 %v1374, %v1373
      %v1418 = vpack.c.b16 %v1376, %v1375
      %v1419 = vpack.c.b16 %v1378, %v1377
      %v1420 = vpack.c.b16 %v1380, %v1379
      %v1421 = vpack.c.b16 %v1382, %v1381
      %v1422 = vpack.c.b16 %v1384, %v1383
      %v1423 = vpack.c.b16 %v1386, %v1385
      %v1424 = vpack.c.b16 %v1388, %v1387
      %v1425 = vpack.c.b16 %v1390, %v1389
      %v1426 = vpack.c.b16 %v1392, %v1391
      %v1427 = vpack.c.b16 %v1394, %v1393
      %v1428 = vpack.c.b16 %v1396, %v1395
      %1461 = vmatprep.subr.bf16.mxu0 0
      %1462 = vmatpush1.bf16.msra.mxu0 %v1404
      %1463 = vmatprep.subr.bf16.mxu0 0
      %1464 = vmatpush1.bf16.msra.mxu0 %v1403
      %1465 = vmatprep.subr.bf16.mxu0 0
      %1466 = vmatpush1.bf16.msra.mxu0 %v1402
      %1467 = vmatprep.subr.bf16.mxu0 0
      %1468 = vmatpush1.bf16.msra.mxu0 %v1401
      %1469 = vmatprep.subr.bf16.mxu0 0
      %1470 = vmatpush1.bf16.msra.mxu0 %v1400
      %1471 = vmatprep.subr.bf16.mxu0 0
      %1472 = vmatpush1.bf16.msra.mxu0 %v1399
      %1473 = vmatprep.subr.bf16.mxu0 0
      %1474 = vmatpush1.bf16.msra.mxu0 %v1398
      %1475 = vmatprep.subr.bf16.mxu0 0
      %1476 = vmatpush1.bf16.msra.mxu0 %v1397
      %1477 = vmatprep.subr.bf16.mxu0 0
      %1478 = vmatpush2.bf16.msra.mxu0 %v1412
      %1479 = vmatprep.subr.bf16.mxu0 0
      %1480 = vmatpush2.bf16.msra.mxu0 %v1411
      %1481 = vmatprep.subr.bf16.mxu0 0
      %1482 = vmatpush2.bf16.msra.mxu0 %v1410
      %1483 = vmatprep.subr.bf16.mxu0 0
      %1484 = vmatpush2.bf16.msra.mxu0 %v1409
      %1485 = vmatprep.subr.bf16.mxu0 0
      %1486 = vmatpush2.bf16.msra.mxu0 %v1408
      %1487 = vmatprep.subr.bf16.mxu0 0
      %1488 = vmatpush2.bf16.msra.mxu0 %v1407
      %1489 = vmatprep.subr.bf16.mxu0 0
      %1490 = vmatpush2.bf16.msra.mxu0 %v1406
      %1491 = vmatprep.subr.bf16.mxu0 0
      %1492 = vmatpush2.bf16.msra.mxu0 %v1405
      %1493 = vmatprep.mubr.bf16.mxu0 %v1206
      %1494 = vmatmul.mubr.bf16.gmra.mxu0 %v1205
      %v1495 = vpop.f32.mrf.mxu0
      %v1496 = vadd.f32 %v1107, %v1495
      %v1497 = vpop.f32.mrf.mxu0
      %v1498 = vpop.f32.mrf.mxu0
      %v1499 = vadd.f32 %v1107, %v1498
      %v1500 = vpop.f32.mrf.mxu0
      %1501 = vmatprep.mubr.bf16.mxu0 %v1210
      %1502 = vmatmul.mubr.bf16.gmra.mxu0 %v1209
      %v1503 = vpop.f32.mrf.mxu0
      %v1504 = vadd.f32 %v1107, %v1503
      %v1505 = vpop.f32.mrf.mxu0
      %v1506 = vpop.f32.mrf.mxu0
      %v1507 = vadd.f32 %v1107, %v1506
      %v1508 = vpop.f32.mrf.mxu0
      %1509 = vmatprep.mubr.bf16.mxu0 %v1214
      %1510 = vmatmul.mubr.bf16.gmra.mxu0 %v1213
      %v1511 = vpop.f32.mrf.mxu0
      %v1512 = vadd.f32 %v1107, %v1511
      %v1513 = vpop.f32.mrf.mxu0
      %v1514 = vpop.f32.mrf.mxu0
      %v1515 = vadd.f32 %v1107, %v1514
      %v1516 = vpop.f32.mrf.mxu0
      %1517 = vmatprep.mubr.bf16.mxu0 %v1218
      %1518 = vmatmul.mubr.bf16.gmra.mxu0 %v1217
      %v1519 = vpop.f32.mrf.mxu0
      %v1520 = vadd.f32 %v1107, %v1519
      %v1521 = vpop.f32.mrf.mxu0
      %v1522 = vpop.f32.mrf.mxu0
      %v1523 = vadd.f32 %v1107, %v1522
      %v1524 = vpop.f32.mrf.mxu0
      %1525 = vmatprep.mubr.bf16.mxu0 %v1222
      %1526 = vmatmul.mubr.bf16.gmra.mxu0 %v1221
      %v1527 = vpop.f32.mrf.mxu0
      %v1528 = vadd.f32 %v1107, %v1527
      %v1529 = vpop.f32.mrf.mxu0
      %v1530 = vpop.f32.mrf.mxu0
      %v1531 = vadd.f32 %v1107, %v1530
      %v1532 = vpop.f32.mrf.mxu0
      %1533 = vmatprep.mubr.bf16.mxu0 %v1226
      %1534 = vmatmul.mubr.bf16.gmra.mxu0 %v1225
      %v1535 = vpop.f32.mrf.mxu0
      %v1536 = vadd.f32 %v1107, %v1535
      %v1537 = vpop.f32.mrf.mxu0
      %v1538 = vpop.f32.mrf.mxu0
      %v1539 = vadd.f32 %v1107, %v1538
      %v1540 = vpop.f32.mrf.mxu0
      %1541 = vmatprep.mubr.bf16.mxu0 %v1230
      %1542 = vmatmul.mubr.bf16.gmra.mxu0 %v1229
      %v1543 = vpop.f32.mrf.mxu0
      %v1544 = vadd.f32 %v1107, %v1543
      %v1545 = vpop.f32.mrf.mxu0
      %v1546 = vpop.f32.mrf.mxu0
      %v1547 = vadd.f32 %v1107, %v1546
      %v1548 = vpop.f32.mrf.mxu0
      %1549 = vmatprep.mubr.bf16.mxu0 %v1234
      %1550 = vmatmul.mubr.bf16.gmra.mxu0 %v1233
      %v1551 = vpop.f32.mrf.mxu0
      %v1552 = vadd.f32 %v1107, %v1551
      %v1553 = vpop.f32.mrf.mxu0
      %v1554 = vpop.f32.mrf.mxu0
      %v1555 = vadd.f32 %v1107, %v1554
      %v1556 = vpop.f32.mrf.mxu0
      %1557 = vdwg.mxu0
      %1558 = vmatprep.subr.bf16.mxu0 0
      %1559 = vmatpush1.bf16.msra.mxu0 %v1420
      %1560 = vmatprep.subr.bf16.mxu0 0
      %1561 = vmatpush1.bf16.msra.mxu0 %v1419
      %1562 = vmatprep.subr.bf16.mxu0 0
      %1563 = vmatpush1.bf16.msra.mxu0 %v1418
      %1564 = vmatprep.subr.bf16.mxu0 0
      %1565 = vmatpush1.bf16.msra.mxu0 %v1417
      %1566 = vmatprep.subr.bf16.mxu0 0
      %1567 = vmatpush1.bf16.msra.mxu0 %v1416
      %1568 = vmatprep.subr.bf16.mxu0 0
      %1569 = vmatpush1.bf16.msra.mxu0 %v1415
      %1570 = vmatprep.subr.bf16.mxu0 0
      %1571 = vmatpush1.bf16.msra.mxu0 %v1414
      %1572 = vmatprep.subr.bf16.mxu0 0
      %1573 = vmatpush1.bf16.msra.mxu0 %v1413
      %1574 = vmatprep.subr.bf16.mxu0 0
      %1575 = vmatpush2.bf16.msra.mxu0 %v1428
      %1576 = vmatprep.subr.bf16.mxu0 0
      %1577 = vmatpush2.bf16.msra.mxu0 %v1427
      %1578 = vmatprep.subr.bf16.mxu0 0
      %1579 = vmatpush2.bf16.msra.mxu0 %v1426
      %1580 = vmatprep.subr.bf16.mxu0 0
      %1581 = vmatpush2.bf16.msra.mxu0 %v1425
      %1582 = vmatprep.subr.bf16.mxu0 0
      %1583 = vmatpush2.bf16.msra.mxu0 %v1424
      %1584 = vmatprep.subr.bf16.mxu0 0
      %1585 = vmatpush2.bf16.msra.mxu0 %v1423
      %1586 = vmatprep.subr.bf16.mxu0 0
      %1587 = vmatpush2.bf16.msra.mxu0 %v1422
      %1588 = vmatprep.subr.bf16.mxu0 0
      %1589 = vmatpush2.bf16.msra.mxu0 %v1421
      %1590 = vmatprep.mubr.bf16.mxu0 %v1208
      %1591 = vmatmul.mubr.bf16.gmra.mxu0 %v1207
      %v1592 = vpop.f32.mrf.mxu0
      %v1593 = vadd.f32 %v1496, %v1592
      %v1594 = vpop.f32.mrf.mxu0
      %v1595 = vpop.f32.mrf.mxu0
      %v1596 = vadd.f32 %v1499, %v1595
      %v1597 = vpop.f32.mrf.mxu0
      %1598 = vmatprep.mubr.bf16.mxu0 %v1212
      %1599 = vmatmul.mubr.bf16.gmra.mxu0 %v1211
      %v1600 = vpop.f32.mrf.mxu0
      %v1601 = vadd.f32 %v1504, %v1600
      %v1602 = vpop.f32.mrf.mxu0
      %v1603 = vpop.f32.mrf.mxu0
      %v1604 = vadd.f32 %v1507, %v1603
      %v1605 = vpop.f32.mrf.mxu0
      %1606 = vmatprep.mubr.bf16.mxu0 %v1216
      %1607 = vmatmul.mubr.bf16.gmra.mxu0 %v1215
      %v1608 = vpop.f32.mrf.mxu0
      %v1609 = vadd.f32 %v1512, %v1608
      %v1610 = vpop.f32.mrf.mxu0
      %v1611 = vpop.f32.mrf.mxu0
      %v1612 = vadd.f32 %v1515, %v1611
      %v1613 = vpop.f32.mrf.mxu0
      %1614 = vmatprep.mubr.bf16.mxu0 %v1220
      %1615 = vmatmul.mubr.bf16.gmra.mxu0 %v1219
      %v1616 = vpop.f32.mrf.mxu0
      %v1617 = vadd.f32 %v1520, %v1616
      %v1618 = vpop.f32.mrf.mxu0
      %v1619 = vpop.f32.mrf.mxu0
      %v1620 = vadd.f32 %v1523, %v1619
      %v1621 = vpop.f32.mrf.mxu0
      %1622 = vmatprep.mubr.bf16.mxu0 %v1224
      %1623 = vmatmul.mubr.bf16.gmra.mxu0 %v1223
      %v1624 = vpop.f32.mrf.mxu0
      %v1625 = vadd.f32 %v1528, %v1624
      %v1626 = vpop.f32.mrf.mxu0
      %v1627 = vpop.f32.mrf.mxu0
      %v1628 = vadd.f32 %v1531, %v1627
      %v1629 = vpop.f32.mrf.mxu0
      %1630 = vmatprep.mubr.bf16.mxu0 %v1228
      %1631 = vmatmul.mubr.bf16.gmra.mxu0 %v1227
      %v1632 = vpop.f32.mrf.mxu0
      %v1633 = vadd.f32 %v1536, %v1632
      %v1634 = vpop.f32.mrf.mxu0
      %v1635 = vpop.f32.mrf.mxu0
      %v1636 = vadd.f32 %v1539, %v1635
      %v1637 = vpop.f32.mrf.mxu0
      %1638 = vmatprep.mubr.bf16.mxu0 %v1232
      %1639 = vmatmul.mubr.bf16.gmra.mxu0 %v1231
      %v1640 = vpop.f32.mrf.mxu0
      %v1641 = vadd.f32 %v1544, %v1640
      %v1642 = vpop.f32.mrf.mxu0
      %v1643 = vpop.f32.mrf.mxu0
      %v1644 = vadd.f32 %v1547, %v1643
      %v1645 = vpop.f32.mrf.mxu0
      %1646 = vmatprep.mubr.bf16.mxu0 %v1236
      %1647 = vmatmul.mubr.bf16.gmra.mxu0 %v1235
      %v1648 = vpop.f32.mrf.mxu0
      %v1649 = vadd.f32 %v1552, %v1648
      %v1650 = vpop.f32.mrf.mxu0
      %v1651 = vpop.f32.mrf.mxu0
      %v1652 = vadd.f32 %v1555, %v1651
      %v1653 = vpop.f32.mrf.mxu0
      %1654 = vdwg.mxu0
      %v1655 = vmax.f32 %v1593, 0.0
      %v1656 = vmax.f32 %v1596, 0.0
      %v1657 = vmax.f32 %v1601, 0.0
      %v1658 = vmax.f32 %v1604, 0.0
      %v1659 = vmax.f32 %v1609, 0.0
      %v1660 = vmax.f32 %v1612, 0.0
      %v1661 = vmax.f32 %v1617, 0.0
      %v1662 = vmax.f32 %v1620, 0.0
      %v1663 = vmax.f32 %v1625, 0.0
      %v1664 = vmax.f32 %v1628, 0.0
      %v1665 = vmax.f32 %v1633, 0.0
      %v1666 = vmax.f32 %v1636, 0.0
      %v1667 = vmax.f32 %v1641, 0.0
      %v1668 = vmax.f32 %v1644, 0.0
      %v1669 = vmax.f32 %v1649, 0.0
      %v1670 = vmax.f32 %v1652, 0.0
      %v1671 = vadd.f32 %v315, %v1655
      %v1672 = vadd.f32 %v316, %v1656
      %v1673 = vadd.f32 %v317, %v1657
      %v1674 = vadd.f32 %v318, %v1658
      %v1675 = vadd.f32 %v319, %v1659
      %v1676 = vadd.f32 %v320, %v1660
      %v1677 = vadd.f32 %v321, %v1661
      %v1678 = vadd.f32 %v322, %v1662
      %v1679 = vadd.f32 %v323, %v1663
      %v1680 = vadd.f32 %v324, %v1664
      %v1681 = vadd.f32 %v325, %v1665
      %v1682 = vadd.f32 %v326, %v1666
      %v1683 = vadd.f32 %v327, %v1667
      %v1684 = vadd.f32 %v328, %v1668
      %v1685 = vadd.f32 %v329, %v1669
      %v1686 = vadd.f32 %v330, %v1670
      %1687 = vst [vmem:[#allocation2] sm:$0xff] %v1671
      %1688 = vst [vmem:[#allocation2 + $0x8] sm:$0xff] %v1672
      %1689 = vst [vmem:[#allocation2 + $0x10] sm:$0xff] %v1673
      %1690 = vst [vmem:[#allocation2 + $0x18] sm:$0xff] %v1674
      %1691 = vst [vmem:[#allocation2 + $0x20] sm:$0xff] %v1675
      %1692 = vst [vmem:[#allocation2 + $0x28] sm:$0xff] %v1676
      %1693 = vst [vmem:[#allocation2 + $0x30] sm:$0xff] %v1677
      %1694 = vst [vmem:[#allocation2 + $0x38] sm:$0xff] %v1678
      %1695 = vst [vmem:[#allocation2 + $0x40] sm:$0xff] %v1679
      %1696 = vst [vmem:[#allocation2 + $0x48] sm:$0xff] %v1680
      %1697 = vst [vmem:[#allocation2 + $0x50] sm:$0xff] %v1681
      %1698 = vst [vmem:[#allocation2 + $0x58] sm:$0xff] %v1682
      %1699 = vst [vmem:[#allocation2 + $0x60] sm:$0xff] %v1683
      %1700 = vst [vmem:[#allocation2 + $0x68] sm:$0xff] %v1684
      %1701 = vst [vmem:[#allocation2 + $0x70] sm:$0xff] %v1685
      %1702 = vst [vmem:[#allocation2 + $0x78] sm:$0xff] %v1686
      %p1703 = scmp.eq.s32.totalorder %s18, 1
      // Predicated region
      $region53: #{tag_net_forward.1} parent=47 // pred_check
        %p1704 = pneg %p1703
      $region54: #{tag_net_forward.1} parent=47 // pred_check_branch
        %1706 = sbr.rel (%p1704) target = $region56
      $region55: #{tag_net_forward.1} parent=47 // pred_region
        %v1707 = vld [vmem:[%s4] sm:$0xf]
        %v1708 = vpack.c.bf16 %v1672, %v1671
        %v1709 = vpack.c.bf16 %v1674, %v1673
        %v1710 = vpack.c.bf16 %v1676, %v1675
        %v1711 = vpack.c.bf16 %v1678, %v1677
        %v1712 = vpack.c.bf16 %v1680, %v1679
        %v1713 = vpack.c.bf16 %v1682, %v1681
        %v1714 = vpack.c.bf16 %v1684, %v1683
        %v1715 = vpack.c.bf16 %v1686, %v1685
        %1716 = vmatprep.subr.bf16.mxu0 0
        %1717 = vmatpush1.bf16.msra.mxu0 %v1715
        %1718 = vmatprep.subr.bf16.mxu0 0
        %1719 = vmatpush1.bf16.msra.mxu0 %v1714
        %1720 = vmatprep.subr.bf16.mxu0 0
        %1721 = vmatpush1.bf16.msra.mxu0 %v1713
        %1722 = vmatprep.subr.bf16.mxu0 0
        %1723 = vmatpush1.bf16.msra.mxu0 %v1712
        %1724 = vmatprep.subr.bf16.mxu0 0
        %1725 = vmatpush1.bf16.msra.mxu0 %v1711
        %1726 = vmatprep.subr.bf16.mxu0 0
        %1727 = vmatpush1.bf16.msra.mxu0 %v1710
        %1728 = vmatprep.subr.bf16.mxu0 0
        %1729 = vmatpush1.bf16.msra.mxu0 %v1709
        %1730 = vmatprep.subr.bf16.mxu0 0
        %1731 = vmatpush1.bf16.msra.mxu0 %v1708
        %1732 = vmatprep.subr.bf16.mxu0 0
        %1733 = vmatpush2.bf16.msra.mxu0 0
        %1734 = vmatprep.subr.bf16.mxu0 0
        %1735 = vmatpush2.bf16.msra.mxu0 0
        %1736 = vmatprep.subr.bf16.mxu0 0
        %1737 = vmatpush2.bf16.msra.mxu0 0
        %1738 = vmatprep.subr.bf16.mxu0 0
        %1739 = vmatpush2.bf16.msra.mxu0 0
        %1740 = vmatprep.subr.bf16.mxu0 0
        %1741 = vmatpush2.bf16.msra.mxu0 0
        %1742 = vmatprep.subr.bf16.mxu0 0
        %1743 = vmatpush2.bf16.msra.mxu0 0
        %1744 = vmatprep.subr.bf16.mxu0 0
        %1745 = vmatpush2.bf16.msra.mxu0 0
        %1746 = vmatprep.subr.bf16.mxu0 0
        %1747 = vmatpush2.bf16.msra.mxu0 0
        %1748 = vmatprep.mubr.bf16.mxu0 0
        %1749 = vmatmul.mubr.bf16.gmra.mxu0 %v1707
        %v1750 = vpop.f32.mrf.mxu0
        %v1751 = vadd.f32 0.0, %v1750
        %v1752 = vpop.f32.mrf.mxu0
        %v1753 = vpop.f32.mrf.mxu0
        %v1754 = vpop.f32.mrf.mxu0
        %1755 = vdwg.mxu0
        %v1756 = vpack.c.bf16 %v1751, %v1751
        %v1757 = vld [vmem:[%s5] sm:$0xf]
        %v1758 = vld [vmem:[%s5 + $0x4] sm:$0xf]
        %v1759 = vld [vmem:[%s5 + $0x8] sm:$0xf]
        %v1760 = vld [vmem:[%s5 + $0xc] sm:$0xf]
        %v1761 = vld [vmem:[%s5 + $0x10] sm:$0xf]
        %v1762 = vld [vmem:[%s5 + $0x14] sm:$0xf]
        %v1763 = vld [vmem:[%s5 + $0x18] sm:$0xf]
        %v1764 = vld [vmem:[%s5 + $0x1c] sm:$0xf]
        %v1765 = vld [vmem:[%s5 + $0x20] sm:$0xf]
        %v1766 = vld [vmem:[%s5 + $0x24] sm:$0xf]
        %v1767 = vld [vmem:[%s5 + $0x28] sm:$0xf]
        %v1768 = vld [vmem:[%s5 + $0x2c] sm:$0xf]
        %v1769 = vld [vmem:[%s5 + $0x30] sm:$0xf]
        %v1770 = vld [vmem:[%s5 + $0x34] sm:$0xf]
        %v1771 = vld [vmem:[%s5 + $0x38] sm:$0xf]
        %v1772 = vld [vmem:[%s5 + $0x3c] sm:$0xf]
        %v1773 = vld [vmem:[%s6] sm:$0x1]
        %v1775 = vlaneseq
        %v1776 = vshrl.u32 %v1775, 7
        %v1777 = vsub.s32 0, %v1776
        %v1778 = vrot.slane %v1773, %v1777
        %v1796 = vunpack.c.l.b16 %v1757
        %v1797 = vunpack.c.l.b16 %v1758
        %v1798 = vunpack.c.l.b16 %v1759
        %v1799 = vunpack.c.l.b16 %v1760
        %v1800 = vunpack.c.l.b16 %v1761
        %v1801 = vunpack.c.l.b16 %v1762
        %v1802 = vunpack.c.l.b16 %v1763
        %v1803 = vunpack.c.l.b16 %v1764
        %v1804 = vunpack.c.l.b16 %v1765
        %v1805 = vunpack.c.l.b16 %v1766
        %v1806 = vunpack.c.l.b16 %v1767
        %v1807 = vunpack.c.l.b16 %v1768
        %v1808 = vunpack.c.l.b16 %v1769
        %v1809 = vunpack.c.l.b16 %v1770
        %v1810 = vunpack.c.l.b16 %v1771
        %v1811 = vunpack.c.l.b16 %v1772
        %v1812 = vpack.c.b16 %v1797, %v1796
        %v1813 = vpack.c.b16 %v1799, %v1798
        %v1814 = vpack.c.b16 %v1801, %v1800
        %v1815 = vpack.c.b16 %v1803, %v1802
        %v1816 = vpack.c.b16 %v1805, %v1804
        %v1817 = vpack.c.b16 %v1807, %v1806
        %v1818 = vpack.c.b16 %v1809, %v1808
        %v1819 = vpack.c.b16 %v1811, %v1810
        %1828 = vmatprep.subr.bf16.mxu0 0
        %1829 = vmatpush1.bf16.msra.mxu0 %v1819
        %1830 = vmatprep.subr.bf16.mxu0 0
        %1831 = vmatpush1.bf16.msra.mxu0 %v1818
        %1832 = vmatprep.subr.bf16.mxu0 0
        %1833 = vmatpush1.bf16.msra.mxu0 %v1817
        %1834 = vmatprep.subr.bf16.mxu0 0
        %1835 = vmatpush1.bf16.msra.mxu0 %v1816
        %1836 = vmatprep.subr.bf16.mxu0 0
        %1837 = vmatpush1.bf16.msra.mxu0 %v1815
        %1838 = vmatprep.subr.bf16.mxu0 0
        %1839 = vmatpush1.bf16.msra.mxu0 %v1814
        %1840 = vmatprep.subr.bf16.mxu0 0
        %1841 = vmatpush1.bf16.msra.mxu0 %v1813
        %1842 = vmatprep.subr.bf16.mxu0 0
        %1843 = vmatpush1.bf16.msra.mxu0 %v1812
        %1844 = vmatprep.subr.bf16.mxu0 0
        %1845 = vmatpush2.bf16.msra.mxu0 0
        %1846 = vmatprep.subr.bf16.mxu0 0
        %1847 = vmatpush2.bf16.msra.mxu0 0
        %1848 = vmatprep.subr.bf16.mxu0 0
        %1849 = vmatpush2.bf16.msra.mxu0 0
        %1850 = vmatprep.subr.bf16.mxu0 0
        %1851 = vmatpush2.bf16.msra.mxu0 0
        %1852 = vmatprep.subr.bf16.mxu0 0
        %1853 = vmatpush2.bf16.msra.mxu0 0
        %1854 = vmatprep.subr.bf16.mxu0 0
        %1855 = vmatpush2.bf16.msra.mxu0 0
        %1856 = vmatprep.subr.bf16.mxu0 0
        %1857 = vmatpush2.bf16.msra.mxu0 0
        %1858 = vmatprep.subr.bf16.mxu0 0
        %1859 = vmatpush2.bf16.msra.mxu0 0
        %1860 = vmatprep.mubr.bf16.mxu0 0
        %1861 = vmatmul.mubr.bf16.gmra.mxu0 %v1756
        %v1862 = vpop.f32.mrf.mxu0
        %v1863 = vadd.f32 %v1778, %v1862
        %v1864 = vpop.f32.mrf.mxu0
        %v1865 = vpop.f32.mrf.mxu0
        %v1866 = vpop.f32.mrf.mxu0
        %1867 = vdwg.mxu0
        %1868 = vst [vmem:[%s7] sm:$0xff] %v1863
      $region56: #{tag_net_forward.1} parent=47 // pred_fallthru
        _
      // Predicated region
      $region57: #{tag_net_forward.1} parent=47 // pred_check
        %p1869 = pneg %p188
      $region58: #{tag_net_forward.1} parent=47 // pred_check_branch
        %1871 = sbr.rel (%p1869) target = $region60
      $region59: #{tag_net_forward.1} parent=47 // pred_region
        _
      $region60: #{tag_net_forward.1} parent=47 // pred_fallthru
        _
      // Predicated region
      $region61: #{tag_net_forward.1} parent=47 // pred_check
        %p1872 = pneg %p188
      $region62: #{tag_net_forward.1} parent=47 // pred_check_branch
        %1874 = sbr.rel (%p1872) target = $region64
      $region63: #{tag_net_forward.1} parent=47 // pred_region
        _
      $region64: #{tag_net_forward.1} parent=47 // pred_fallthru
        _
    $region48: #{tag_net_forward.1} parent=5 // pred_fallthru
      _
    %p1875 = scmp.le.s32.totalorder 2, %s13
    // Predicated region
    $region65: #{tag_net_forward.1} parent=5 // pred_check
      %p1876 = pneg %p1875
    $region66: #{tag_net_forward.1} parent=5 // pred_check_branch
      %1878 = sbr.rel (%p1876) target = $region68
    $region67: #{tag_net_forward.1} parent=5 // pred_region
      %s1879 = ssub.s32 %s13, 2
    $region68: #{tag_net_forward.1} parent=5 // pred_fallthru
      _
  $region6: #{tag_net_forward.1} parent=0 // loop_footer
    %s17 = sadd.s32 1, %s13
  $region7: #{tag_net_forward.1} parent=0 // loop_footer_branch
    %12 = sbr.rel target = $region3
  $region8: #{tag_net_forward.1} parent=0 // loop_exit
    _

</llo_original>
